<compile_context>
chip_gen: v7x
topology: tpu7x:2x2x1
jax: 0.10.0
libtpu: 0.0.40
codegen_flags: <defaults>
</compile_context>

<pallas_src>
import functools

import jax
import jax.numpy as jnp
from jax import lax
from jax.experimental import pallas as pl
from jax.experimental.pallas import tpu as pltpu


def _round_up(x, m):
    return ((x + m - 1) // m) * m


def _maxpool_h2_pad1(r):
    """MaxPool(kernel=2, stride=2, pad=1) along the leading axis of (Hin, C, L).

    `r` must already be ReLU'd (>= 0), so the -inf pooling pads of the PyTorch
    module are equivalent to implicit zero pads
    (relu(max(x, -inf)) == max(relu(x), 0)).  Leading-dim slices/reshapes only,
    so no lane/sublane relayouts.
    """
    Hin, C, L = r.shape
    H1 = Hin // 2 + 1
    pieces = [r[0:1]]                                    # window 0: (pad, r[0])
    if Hin % 2 == 0:
        if Hin > 2:
            mid = r[1:Hin - 1].reshape(H1 - 2, 2, C, L)  # pairs (1,2),(3,4),...
            pieces.append(jnp.maximum(mid[:, 0], mid[:, 1]))
        pieces.append(r[Hin - 1:Hin])                    # last window: (r[-1], pad)
    else:
        if Hin > 1:
            mid = r[1:Hin].reshape(H1 - 1, 2, C, L)
            pieces.append(jnp.maximum(mid[:, 0], mid[:, 1]))
    if len(pieces) == 1:
        return pieces[0]
    return jnp.concatenate(pieces, axis=0)               # (H1, C, L)


def cnn_kernel(x_ref, w1_ref, b1_ref, w2_ref, b2_ref, o_ref, *, banded):
    # x_ref : (H, L)                 L = lane tile (batch*width columns, independent)
    # w1_ref: (3, C1)                conv1 weight, kh-major rows
    # b1_ref: (1, C1)
    # w2_ref: banded   -> (H1*C2, H1*C1)  block-tridiagonal conv2 weight
    #         fallback -> (C2, 3*C1)      kh-major flattened conv2 weight
    # b2_ref: (1, C2)
    # o_ref : (H2, C2, L)
    f32 = jnp.float32
    H, L = x_ref.shape
    C1 = w1_ref.shape[1]
    C2 = b2_ref.shape[1]
    H1 = H // 2 + 1

    x = x_ref[...]                                       # (H, L)
    w1 = w1_ref[...]                                     # (3, C1)
    b1 = b1_ref[...]                                     # (1, C1)
    b2 = b2_ref[...]                                     # (1, C2)

    # ---- conv1: kernel (3,1), zero padding 1 along H (VPU broadcasts) --------
    zrow = jnp.zeros((1, L), f32)
    xm1 = jnp.concatenate([zrow, x[:H - 1]], axis=0)     # x[h-1]
    xp1 = jnp.concatenate([x[1:], zrow], axis=0)         # x[h+1]
    y1 = (xm1[:, None, :] * w1[0:1, :, None]
          + x[:, None, :] * w1[1:2, :, None]
          + xp1[:, None, :] * w1[2:3, :, None]
          + b1[:, :, None])                              # (H, C1, L)

    # ---- relu then maxpool1 (equivalent to PyTorch pool-then-relu) -----------
    p1 = _maxpool_h2_pad1(jnp.maximum(y1, 0.0))          # (H1, C1, L)

    # ---- conv2 -----------------------------------------------------------------
    if banded:
        # ONE MXU matmul: block-tridiagonal weight x (H1*C1, L) slab.
        # Zero padding along H is baked into the zero blocks of the weight.
        p1_2d = p1.reshape(H1 * C1, L)                   # free merge: C1 % 8 == 0
        y2 = jnp.dot(w2_ref[...], p1_2d,
                     preferred_element_type=f32).reshape(H1, C2, L)
    else:
        # Fallback for very large H: per-output-row window dots; boundary rows
        # use 2-slab windows so no padded p1 copy is ever materialized.
        w2 = w2_ref[...]                                 # (C2, 3*C1), col = kh*C1+c1
        rows = []
        for h in range(H1):
            lo = max(0, h - 1)
            hi = min(H1 - 1, h + 1)
            nk = hi - lo + 1
            klo = lo - (h - 1)                           # first kernel tap used
            rhs = p1[lo:hi + 1].reshape(nk * C1, L)
            rows.append(jnp.dot(w2[:, klo * C1:(klo + nk) * C1], rhs,
                                preferred_element_type=f32)[None])
        y2 = jnp.concatenate(rows, axis=0)               # (H1, C2, L)
    y2 = y2 + b2[:, :, None]

    # ---- relu then maxpool2, lane-dense store ---------------------------------
    o_ref[...] = _maxpool_h2_pad1(jnp.maximum(y2, 0.0))  # (H2, C2, L)


@functools.partial(jax.jit, static_argnames=("lane_tile",))
def customized_cnn_forward(x, w1, b1, w2, b2, *, lane_tile=1024):
    """x: (B, 1, H, W) float32 (NCHW, like PyTorch).  Returns (B, 64, H2*W)."""
    B, Cin, H, W = x.shape
    assert Cin == 1
    C1 = w1.shape[0]
    C2 = w2.shape[0]
    H1 = H // 2 + 1
    H2 = H1 // 2 + 1

    # ---- lane tiling: fold batch*width into lanes, right-size the tile --------
    N = B * W
    # Largest useful tile is half the problem (so there are >= 2 balanced
    # "parallel" steps to feed both v7x TensorCores whenever N > 128), rounded
    # up to the 128-lane vreg width, capped at the requested lane_tile.
    lane_tile_eff = max(128, min(lane_tile, _round_up(pl.cdiv(N, 2), 128)))
    num_tiles = pl.cdiv(N, lane_tile_eff)
    n_pad = num_tiles * lane_tile_eff

    xf = jnp.transpose(x.reshape(B, H, W).astype(jnp.float32), (1, 0, 2)).reshape(H, N)
    xf = jnp.pad(xf, ((0, 0), (0, n_pad - N)))

    w1f = jnp.transpose(w1.reshape(C1, 3), (1, 0)).astype(jnp.float32)   # (3, C1)
    b1f = b1.reshape(1, C1).astype(jnp.float32)
    b2f = b2.reshape(1, C2).astype(jnp.float32)

    # conv2 weight taps: (C2, C1, 3, 1) -> (3, C2, C1)
    w2taps = jnp.transpose(w2[..., 0], (2, 0, 1)).astype(jnp.float32)

    # Banded "conv as one matmul" weight: block-tridiagonal (H1*C2, H1*C1) with
    #   W_big[h*C2:(h+1)*C2, hp*C1:(hp+1)*C1] = w2[:, :, hp-h+1, 0]  for |hp-h| <= 1.
    banded = (H1 * C2) * (H1 * C1) * 4 <= (4 << 20)      # keep weight <= 4 MiB VMEM
    if banded:
        zero_blk = jnp.zeros((C2, C1), jnp.float32)
        block_rows = []
        for h in range(H1):
            row = []
            for hp in range(H1):
                kh = hp - h + 1
                row.append(w2taps[kh] if 0 <= kh <= 2 else zero_blk)
            block_rows.append(jnp.concatenate(row, axis=1))
        w2k = jnp.concatenate(block_rows, axis=0)        # (H1*C2, H1*C1)
    else:
        # kh-major flattened taps for the per-window fallback: col = kh*C1 + c1
        w2k = jnp.transpose(w2taps, (1, 0, 2)).reshape(C2, 3 * C1)

    kernel = functools.partial(cnn_kernel, banded=banded)

    compiler_kwargs = dict(dimension_semantics=("parallel",))
    if lane_tile_eff > 1024:
        # Rough VMEM need (live intermediates + double-buffered I/O).  The
        # default scoped limits (16 MiB v5e / 32 MiB v6e, v7x) already cover the
        # <= 1024-lane default, so this only triggers for explicit big tiles.
        per_lane = 4 * (3 * H + 2 * H * C1 + 2 * H1 * C1 + 2 * H1 * C2 + 3 * H2 * C2)
        need = per_lane * lane_tile_eff + 2 * int(w2k.size) * 4 + (2 << 20)
        compiler_kwargs["vmem_limit_bytes"] = int(min(need, 64 * 1024 * 1024))

    out = pl.pallas_call(
        kernel,
        out_shape=jax.ShapeDtypeStruct((H2, C2, n_pad), jnp.float32),
        grid=(num_tiles,),
        in_specs=[
            pl.BlockSpec((H, lane_tile_eff), lambda t: (0, t)),
            pl.BlockSpec((3, C1), lambda t: (0, 0)),
            pl.BlockSpec((1, C1), lambda t: (0, 0)),
            pl.BlockSpec(tuple(w2k.shape), lambda t: (0, 0)),
            pl.BlockSpec((1, C2), lambda t: (0, 0)),
        ],
        out_specs=pl.BlockSpec((H2, C2, lane_tile_eff), lambda t: (0, 0, t)),
        compiler_params=pltpu.CompilerParams(**compiler_kwargs),
    )(xf, w1f, b1f, w2k, b2f)

    # ---- unfold lanes back to PyTorch layout (B, C2, H2*W) --------------------
    # Note: downstream consumers could keep the kernel's lane-dense (H2, C2, B*W)
    # layout and skip this small XLA transpose (the output path is write-dominated).
    out = out[:, :, :N].reshape(H2, C2, B, W)
    out = jnp.transpose(out, (2, 1, 0, 3)).reshape(B, C2, H2 * W)
    return out


def reference_forward(x, w1, b1, w2, b2):
    """Pure-JAX reference with the exact PyTorch semantics (for validation)."""
    dn = ("NCHW", "OIHW", "NCHW")

    def maxpool_h2_pad1(y):
        return lax.reduce_window(
            y, -jnp.inf, lax.max,
            window_dimensions=(1, 1, 2, 1),
            window_strides=(1, 1, 2, 1),
            padding=[(0, 0), (0, 0), (1, 1), (0, 0)])

    y = lax.conv_general_dilated(x, w1, (1, 1), [(1, 1), (0, 0)],
                                 dimension_numbers=dn) + b1.reshape(1, -1, 1, 1)
    y = jnp.maximum(maxpool_h2_pad1(y), 0.0)
    y = lax.conv_general_dilated(y, w2, (1, 1), [(1, 1), (0, 0)],
                                 dimension_numbers=dn) + b2.reshape(1, -1, 1, 1)
    y = jnp.maximum(maxpool_h2_pad1(y), 0.0)
    B, C, Hh, Ww = y.shape
    return y.reshape(B, C, Hh * Ww)


def _run_check(key, B, H, W, C1, C2):
    kx, k1, k2, k3, k4 = jax.random.split(key, 5)
    x = jax.random.normal(kx, (B, 1, H, W), dtype=jnp.float32)
    w1 = jax.random.normal(k1, (C1, 1, 3, 1), dtype=jnp.float32) * 0.1   # cnn_1.weight
    b1 = jax.random.normal(k2, (C1,), dtype=jnp.float32) * 0.1           # cnn_1.bias
    w2 = jax.random.normal(k3, (C2, C1, 3, 1), dtype=jnp.float32) * 0.1  # cnn_2.weight
    b2 = jax.random.normal(k4, (C2,), dtype=jnp.float32) * 0.1           # cnn_2.bias

    out = jax.block_until_ready(customized_cnn_forward(x, w1, b1, w2, b2))
    ref = reference_forward(x, w1, b1, w2, b2)
    assert out.shape == ref.shape, (out.shape, ref.shape)
    assert jnp.allclose(out, ref, atol=1e-4, rtol=1e-4), (
        float(jnp.max(jnp.abs(out - ref))))
    return out


if __name__ == "__main__":
    C1, C2 = 32, 64
    key = jax.random.PRNGKey(0)
    k1, k2 = jax.random.split(key)

    # Small shapes consistent with the module: batch=2, in-channels=1, H=16, W=8.
    _run_check(k1, B=2, H=16, W=8, C1=C1, C2=C2)
    # Slightly larger check (seq_len=22 hinted by the config; exercises the
    # multi-tile "parallel" grid path).
    _run_check(k2, B=20, H=22, W=8, C1=C1, C2=C2)

    print("KERNEL_OK")
</pallas_src>

<mosaic_0001>
module attributes {stable_mosaic.version = 11 : i64} {
  func.func @cnn_kernel(%arg0: i32, %arg1: memref<16x128xf32, #tpu.memory_space<vmem>>, %arg2: memref<3x32xf32, #tpu.memory_space<vmem>>, %arg3: memref<1x32xf32, #tpu.memory_space<vmem>>, %arg4: memref<576x288xf32, #tpu.memory_space<vmem>>, %arg5: memref<1x64xf32, #tpu.memory_space<vmem>>, %arg6: memref<5x64x128xf32, #tpu.memory_space<vmem>>) attributes {dimension_semantics = [#tpu.dimension_semantics<parallel>], iteration_bounds = array<i64: 1>, scalar_prefetch = 0 : i64, scratch_operands = 0 : i64, tpu.core_type = #tpu.core_type<tc>, window_params = [{transform_indices = @transform_0, window_bounds = array<i64: 16, 128>}, {pipeline_mode = #tpu.pipeline_mode<synchronous>, transform_indices = @transform_1, window_bounds = array<i64: 3, 32>}, {pipeline_mode = #tpu.pipeline_mode<synchronous>, transform_indices = @transform_2, window_bounds = array<i64: 1, 32>}, {pipeline_mode = #tpu.pipeline_mode<synchronous>, transform_indices = @transform_3, window_bounds = array<i64: 576, 288>}, {pipeline_mode = #tpu.pipeline_mode<synchronous>, transform_indices = @transform_4, window_bounds = array<i64: 1, 64>}, {transform_indices = @transform_5, window_bounds = array<i64: 5, 64, 128>}]} {
    %c0 = arith.constant 0 : index
    %c0_0 = arith.constant 0 : index
    %0 = vector.load %arg1[%c0, %c0_0] : memref<16x128xf32, #tpu.memory_space<vmem>>, vector<16x128xf32>
    %c0_1 = arith.constant 0 : index
    %c0_2 = arith.constant 0 : index
    %1 = vector.load %arg2[%c0_1, %c0_2] : memref<3x32xf32, #tpu.memory_space<vmem>>, vector<3x32xf32>
    %c0_3 = arith.constant 0 : index
    %c0_4 = arith.constant 0 : index
    %2 = vector.load %arg3[%c0_3, %c0_4] : memref<1x32xf32, #tpu.memory_space<vmem>>, vector<1x32xf32>
    %c0_5 = arith.constant 0 : index
    %c0_6 = arith.constant 0 : index
    %3 = vector.load %arg5[%c0_5, %c0_6] : memref<1x64xf32, #tpu.memory_space<vmem>>, vector<1x64xf32>
    %cst = arith.constant 0.000000e+00 : f32
    %4 = vector.broadcast %cst : f32 to vector<1x128xf32>
    %5 = vector.extract_strided_slice %0 {offsets = [0, 0], sizes = [15, 128], strides = [1, 1]} : vector<16x128xf32> to vector<15x128xf32>
    %6 = tpu.concatenate %4, %5 in 0 : vector<1x128xf32>, vector<15x128xf32> -> vector<16x128xf32>
    %7 = vector.extract_strided_slice %0 {offsets = [1, 0], sizes = [15, 128], strides = [1, 1]} : vector<16x128xf32> to vector<15x128xf32>
    %8 = tpu.concatenate %7, %4 in 0 : vector<15x128xf32>, vector<1x128xf32> -> vector<16x128xf32>
    %9 = vector.shape_cast %6 : vector<16x128xf32> to vector<16x1x128xf32>
    %10 = vector.extract_strided_slice %1 {offsets = [0, 0], sizes = [1, 32], strides = [1, 1]} : vector<3x32xf32> to vector<1x32xf32>
    %11 = vector.shape_cast %10 : vector<1x32xf32> to vector<1x32x1xf32>
    %12 = vector.broadcast %9 : vector<16x1x128xf32> to vector<16x32x128xf32>
    %13 = vector.broadcast %11 : vector<1x32x1xf32> to vector<16x32x128xf32>
    %14 = arith.mulf %12, %13 : vector<16x32x128xf32>
    %15 = vector.shape_cast %0 : vector<16x128xf32> to vector<16x1x128xf32>
    %16 = vector.extract_strided_slice %1 {offsets = [1, 0], sizes = [1, 32], strides = [1, 1]} : vector<3x32xf32> to vector<1x32xf32>
    %17 = vector.shape_cast %16 : vector<1x32xf32> to vector<1x32x1xf32>
    %18 = vector.broadcast %15 : vector<16x1x128xf32> to vector<16x32x128xf32>
    %19 = vector.broadcast %17 : vector<1x32x1xf32> to vector<16x32x128xf32>
    %20 = arith.mulf %18, %19 : vector<16x32x128xf32>
    %21 = arith.addf %14, %20 : vector<16x32x128xf32>
    %22 = vector.shape_cast %8 : vector<16x128xf32> to vector<16x1x128xf32>
    %23 = vector.extract_strided_slice %1 {offsets = [2, 0], sizes = [1, 32], strides = [1, 1]} : vector<3x32xf32> to vector<1x32xf32>
    %24 = vector.shape_cast %23 : vector<1x32xf32> to vector<1x32x1xf32>
    %25 = vector.broadcast %22 : vector<16x1x128xf32> to vector<16x32x128xf32>
    %26 = vector.broadcast %24 : vector<1x32x1xf32> to vector<16x32x128xf32>
    %27 = arith.mulf %25, %26 : vector<16x32x128xf32>
    %28 = arith.addf %21, %27 : vector<16x32x128xf32>
    %29 = vector.shape_cast %2 : vector<1x32xf32> to vector<1x32x1xf32>
    %30 = vector.broadcast %29 : vector<1x32x1xf32> to vector<16x32x128xf32>
    %31 = arith.addf %28, %30 : vector<16x32x128xf32>
    %cst_7 = arith.constant 0.000000e+00 : f32
    %32 = vector.broadcast %cst_7 : f32 to vector<16x32x128xf32>
    %33 = arith.maximumf %31, %32 : vector<16x32x128xf32>
    %34 = vector.extract_strided_slice %33 {offsets = [0, 0, 0], sizes = [1, 32, 128], strides = [1, 1, 1]} : vector<16x32x128xf32> to vector<1x32x128xf32>
    %35 = vector.extract_strided_slice %33 {offsets = [1, 0, 0], sizes = [14, 32, 128], strides = [1, 1, 1]} : vector<16x32x128xf32> to vector<14x32x128xf32>
    %36 = vector.shape_cast %35 : vector<14x32x128xf32> to vector<7x2x32x128xf32>
    %37 = vector.extract_strided_slice %36 {offsets = [0, 0, 0, 0], sizes = [7, 1, 32, 128], strides = [1, 1, 1, 1]} : vector<7x2x32x128xf32> to vector<7x1x32x128xf32>
    %38 = vector.shape_cast %37 : vector<7x1x32x128xf32> to vector<7x32x128xf32>
    %39 = vector.extract_strided_slice %36 {offsets = [0, 1, 0, 0], sizes = [7, 1, 32, 128], strides = [1, 1, 1, 1]} : vector<7x2x32x128xf32> to vector<7x1x32x128xf32>
    %40 = vector.shape_cast %39 : vector<7x1x32x128xf32> to vector<7x32x128xf32>
    %41 = arith.maximumf %38, %40 : vector<7x32x128xf32>
    %42 = vector.extract_strided_slice %33 {offsets = [15, 0, 0], sizes = [1, 32, 128], strides = [1, 1, 1]} : vector<16x32x128xf32> to vector<1x32x128xf32>
    %43 = tpu.concatenate %34, %41, %42 in 0 : vector<1x32x128xf32>, vector<7x32x128xf32>, vector<1x32x128xf32> -> vector<9x32x128xf32>
    %44 = vector.shape_cast %43 : vector<9x32x128xf32> to vector<288x128xf32>
    %c0_8 = arith.constant 0 : index
    %c0_9 = arith.constant 0 : index
    %45 = vector.load %arg4[%c0_8, %c0_9] : memref<576x288xf32, #tpu.memory_space<vmem>>, vector<576x288xf32>
    %cst_10 = arith.constant dense<0.000000e+00> : vector<576x128xf32>
    %46 = tpu.matmul %45, %44, %cst_10 {dimension_numbers = #tpu.dot_dimension_numbers<[1], [0], [0], [1], [0, 0, 1, 1], [], []>} : vector<576x288xf32>, vector<288x128xf32>, vector<576x128xf32> -> vector<576x128xf32>
    %47 = vector.shape_cast %46 : vector<576x128xf32> to vector<9x64x128xf32>
    %48 = vector.shape_cast %3 : vector<1x64xf32> to vector<1x64x1xf32>
    %49 = vector.broadcast %48 : vector<1x64x1xf32> to vector<9x64x128xf32>
    %50 = arith.addf %47, %49 : vector<9x64x128xf32>
    %cst_11 = arith.constant 0.000000e+00 : f32
    %51 = vector.broadcast %cst_11 : f32 to vector<9x64x128xf32>
    %52 = arith.maximumf %50, %51 : vector<9x64x128xf32>
    %53 = vector.extract_strided_slice %52 {offsets = [0, 0, 0], sizes = [1, 64, 128], strides = [1, 1, 1]} : vector<9x64x128xf32> to vector<1x64x128xf32>
    %54 = vector.extract_strided_slice %52 {offsets = [1, 0, 0], sizes = [8, 64, 128], strides = [1, 1, 1]} : vector<9x64x128xf32> to vector<8x64x128xf32>
    %55 = vector.shape_cast %54 : vector<8x64x128xf32> to vector<4x2x64x128xf32>
    %56 = vector.extract_strided_slice %55 {offsets = [0, 0, 0, 0], sizes = [4, 1, 64, 128], strides = [1, 1, 1, 1]} : vector<4x2x64x128xf32> to vector<4x1x64x128xf32>
    %57 = vector.shape_cast %56 : vector<4x1x64x128xf32> to vector<4x64x128xf32>
    %58 = vector.extract_strided_slice %55 {offsets = [0, 1, 0, 0], sizes = [4, 1, 64, 128], strides = [1, 1, 1, 1]} : vector<4x2x64x128xf32> to vector<4x1x64x128xf32>
    %59 = vector.shape_cast %58 : vector<4x1x64x128xf32> to vector<4x64x128xf32>
    %60 = arith.maximumf %57, %59 : vector<4x64x128xf32>
    %61 = tpu.concatenate %53, %60 in 0 : vector<1x64x128xf32>, vector<4x64x128xf32> -> vector<5x64x128xf32>
    %c0_12 = arith.constant 0 : index
    %c0_13 = arith.constant 0 : index
    %c0_14 = arith.constant 0 : index
    %62 = vector.load %arg6[%c0_12, %c0_13, %c0_14] : memref<5x64x128xf32, #tpu.memory_space<vmem>>, vector<5x64x128xf32>
    tpu.vector_store %arg6[%c0_12, %c0_13, %c0_14], %61 {strides = array<i32>} : memref<5x64x128xf32, #tpu.memory_space<vmem>>, vector<5x64x128xf32>,
    return
  }
  func.func @transform_0(%arg0: i32) -> (i32, i32) {
    %c0_i32 = arith.constant 0 : i32
    %c0_i32_0 = arith.constant 0 : i32
    return %c0_i32, %arg0 : i32, i32
  }
  func.func @transform_1(%arg0: i32) -> (i32, i32) {
    %c0_i32 = arith.constant 0 : i32
    %c0_i32_0 = arith.constant 0 : i32
    %c0_i32_1 = arith.constant 0 : i32
    return %c0_i32, %c0_i32_0 : i32, i32
  }
  func.func @transform_2(%arg0: i32) -> (i32, i32) {
    %c0_i32 = arith.constant 0 : i32
    %c0_i32_0 = arith.constant 0 : i32
    %c0_i32_1 = arith.constant 0 : i32
    return %c0_i32, %c0_i32_0 : i32, i32
  }
  func.func @transform_3(%arg0: i32) -> (i32, i32) {
    %c0_i32 = arith.constant 0 : i32
    %c0_i32_0 = arith.constant 0 : i32
    %c0_i32_1 = arith.constant 0 : i32
    return %c0_i32, %c0_i32_0 : i32, i32
  }
  func.func @transform_4(%arg0: i32) -> (i32, i32) {
    %c0_i32 = arith.constant 0 : i32
    %c0_i32_0 = arith.constant 0 : i32
    %c0_i32_1 = arith.constant 0 : i32
    return %c0_i32, %c0_i32_0 : i32, i32
  }
  func.func @transform_5(%arg0: i32) -> (i32, i32, i32) {
    %c0_i32 = arith.constant 0 : i32
    %c0_i32_0 = arith.constant 0 : i32
    %c0_i32_1 = arith.constant 0 : i32
    return %c0_i32, %c0_i32_0, %arg0 : i32, i32, i32
  }
}

</mosaic_0001>

<llo_original>
// kernel: customized_cnn_forward.1
$region0: #{customized_cnn_forward.1}
  #allocation0 [shape = 'u32[]', space=smem, size = 0x4, offset = 0x4, fixed_abs, tag = 'smem constant byte address 0x4 - core index']
  #allocation1 [shape = 'u32[144,128]{1,0:T(1,128)}', space=vmem, size = 0x12000, scoped, tag = 'internal scratch']
  %s0 = inlined_call_operand.vmem [shape: f32[16,128], index: 0, kind: input, shape index: {}]
  %s1 = inlined_call_operand.vmem [shape: f32[3,32], index: 1, kind: input, shape index: {}]
  %s2 = inlined_call_operand.vmem [shape: f32[1,32], index: 2, kind: input, shape index: {}]
  %s3 = inlined_call_operand.vmem [shape: f32[576,288], index: 3, kind: input, shape index: {}]
  %s4 = inlined_call_operand.vmem [shape: f32[1,64], index: 4, kind: input, shape index: {}]
  %s5 = inlined_call_operand.vmem [shape: f32[5,64,128], index: 5, kind: output, shape index: {}]
  %s6 = sld [smem:[#allocation0]]
  $region30: #{customized_cnn_forward.1} parent=0
    _
  %s8 = ssub.s32 1, %s6
  %s9 = scalar_select 0, %s8, %s6
  // Predicated region
  $region2: #{customized_cnn_forward.1} parent=0 // pred_check
    _
  $region3: #{customized_cnn_forward.1} parent=0 // pred_check_branch
    %11 = sbr.rel (0) target = $region5
  $region4: #{customized_cnn_forward.1} parent=0 // pred_region
    _
  $region5: #{customized_cnn_forward.1} parent=0 // pred_fallthru
    _
  // Predicated region
  $region6: #{customized_cnn_forward.1} parent=0 // pred_check
    _
  $region7: #{customized_cnn_forward.1} parent=0 // pred_check_branch
    %13 = sbr.rel (0) target = $region9
  $region8: #{customized_cnn_forward.1} parent=0 // pred_region
    _
  $region9: #{customized_cnn_forward.1} parent=0 // pred_fallthru
    _
  // Predicated region
  $region10: #{customized_cnn_forward.1} parent=0 // pred_check
    _
  $region11: #{customized_cnn_forward.1} parent=0 // pred_check_branch
    %15 = sbr.rel (0) target = $region13
  $region12: #{customized_cnn_forward.1} parent=0 // pred_region
    _
  $region13: #{customized_cnn_forward.1} parent=0 // pred_fallthru
    _
  // Predicated region
  $region14: #{customized_cnn_forward.1} parent=0 // pred_check
    _
  $region15: #{customized_cnn_forward.1} parent=0 // pred_check_branch
    %17 = sbr.rel (0) target = $region17
  $region16: #{customized_cnn_forward.1} parent=0 // pred_region
    _
  $region17: #{customized_cnn_forward.1} parent=0 // pred_fallthru
    _
  // Predicated region
  $region18: #{customized_cnn_forward.1} parent=0 // pred_check
    _
  $region19: #{customized_cnn_forward.1} parent=0 // pred_check_branch
    %19 = sbr.rel (0) target = $region21
  $region20: #{customized_cnn_forward.1} parent=0 // pred_region
    _
  $region21: #{customized_cnn_forward.1} parent=0 // pred_fallthru
    _
  %v20 = vld [vmem:[%s0] sm:$0xff]
  %v21 = vld [vmem:[%s0 + $0x8] sm:$0xff]
  %v22 = vld [vmem:[%s1] sm:$0x7]
  %v23 = vld [vmem:[%s2] sm:$0x1]
  %v24 = vld [vmem:[%s4] sm:$0x1]
  %vm27 = vcmask 1040384
  %v28 = vrot.slane %v20, 7
  %v29 = vrot.slane %v21, 7
  %v30 = vsel %vm27, %v28, %v29
  %v32 = vsel %vm27, 0.0, %v28
  %vm33 = vcmask 1046528
  %v34 = vrot.slane %v20, 1
  %v35 = vrot.slane %v21, 1
  %v36 = vsel %vm33, %v34, %v35
  %v38 = vsel %vm33, %v35, 0.0
  %v40 = vcombine.high %v32, %v32
  %v42 = vunpack.c.l.s4 1966171168
  %v43 = vunpack.c.0.s8 %v42
  %v44 = vlaneseq
  %v45 = vshrl.u32 %v44, 7
  %v46 = vsub.s32 %v43, %v45
  %v47 = vrot.slane %v32, %v46
  %v49 = vunpack.c.l.s4 1966171168
  %v50 = vunpack.c.0.s8 %v49
  %v51 = vlaneseq
  %v52 = vshrl.u32 %v51, 7
  %v53 = vsub.s32 %v50, %v52
  %v54 = vrot.slane %v40, %v53
  %v55 = vcombine.high %v47, %v47
  %v56 = vcombine.high %v54, %v54
  %v58 = vunpack.c.l.s4 1966171168
  %v59 = vunpack.c.0.s8 %v58
  %v60 = vlaneseq
  %v61 = vshrl.u32 %v60, 7
  %v62 = vsub.s32 %v59, %v61
  %v63 = vrot.slane %v47, %v62
  %v65 = vunpack.c.l.s4 1966171168
  %v66 = vunpack.c.0.s8 %v65
  %v67 = vlaneseq
  %v68 = vshrl.u32 %v67, 7
  %v69 = vsub.s32 %v66, %v68
  %v70 = vrot.slane %v54, %v69
  %v72 = vunpack.c.l.s4 1966171168
  %v73 = vunpack.c.0.s8 %v72
  %v74 = vlaneseq
  %v75 = vshrl.u32 %v74, 7
  %v76 = vsub.s32 %v73, %v75
  %v77 = vrot.slane %v55, %v76
  %v79 = vunpack.c.l.s4 1966171168
  %v80 = vunpack.c.0.s8 %v79
  %v81 = vlaneseq
  %v82 = vshrl.u32 %v81, 7
  %v83 = vsub.s32 %v80, %v82
  %v84 = vrot.slane %v56, %v83
  %v85 = vcombine.high %v63, %v63
  %v86 = vcombine.high %v70, %v70
  %v87 = vcombine.high %v77, %v77
  %v88 = vcombine.high %v84, %v84
  %v89 = vcombine.high %v30, %v30
  %v91 = vunpack.c.l.s4 1966171168
  %v92 = vunpack.c.0.s8 %v91
  %v93 = vlaneseq
  %v94 = vshrl.u32 %v93, 7
  %v95 = vsub.s32 %v92, %v94
  %v96 = vrot.slane %v30, %v95
  %v98 = vunpack.c.l.s4 1966171168
  %v99 = vunpack.c.0.s8 %v98
  %v100 = vlaneseq
  %v101 = vshrl.u32 %v100, 7
  %v102 = vsub.s32 %v99, %v101
  %v103 = vrot.slane %v89, %v102
  %v104 = vcombine.high %v96, %v96
  %v105 = vcombine.high %v103, %v103
  %v107 = vunpack.c.l.s4 1966171168
  %v108 = vunpack.c.0.s8 %v107
  %v109 = vlaneseq
  %v110 = vshrl.u32 %v109, 7
  %v111 = vsub.s32 %v108, %v110
  %v112 = vrot.slane %v96, %v111
  %v114 = vunpack.c.l.s4 1966171168
  %v115 = vunpack.c.0.s8 %v114
  %v116 = vlaneseq
  %v117 = vshrl.u32 %v116, 7
  %v118 = vsub.s32 %v115, %v117
  %v119 = vrot.slane %v103, %v118
  %v121 = vunpack.c.l.s4 1966171168
  %v122 = vunpack.c.0.s8 %v121
  %v123 = vlaneseq
  %v124 = vshrl.u32 %v123, 7
  %v125 = vsub.s32 %v122, %v124
  %v126 = vrot.slane %v104, %v125
  %v128 = vunpack.c.l.s4 1966171168
  %v129 = vunpack.c.0.s8 %v128
  %v130 = vlaneseq
  %v131 = vshrl.u32 %v130, 7
  %v132 = vsub.s32 %v129, %v131
  %v133 = vrot.slane %v105, %v132
  %v134 = vcombine.high %v112, %v112
  %v135 = vcombine.high %v119, %v119
  %v136 = vcombine.high %v126, %v126
  %v137 = vcombine.high %v133, %v133
  %v138 = vlaneseq
  %v139 = vshrl.u32 %v138, 7
  %v140 = vsub.s32 0, %v139
  %v141 = vrot.slane %v22, %v140
  %143 = vbcast.lane.b32.xlu0 %v141, 256
  %v144 = vpop.permute.xlu0 %143
  %s146 = sor.u32 256, 8
  %147 = vbcast.lane.b32.xlu0 %v141, %s146
  %v148 = vpop.permute.xlu0 %147
  %s150 = sor.u32 256, 16
  %151 = vbcast.lane.b32.xlu0 %v141, %s150
  %v152 = vpop.permute.xlu0 %151
  %s154 = sor.u32 256, 24
  %155 = vbcast.lane.b32.xlu0 %v141, %s154
  %v156 = vpop.permute.xlu0 %155
  %v157 = vlaneseq
  %v158 = vshrl.u32 %v157, 7
  %v159 = vsub.s32 0, %v158
  %v160 = vrot.slane %v63, %v159
  %v161 = vlaneseq
  %v162 = vshrl.u32 %v161, 7
  %v163 = vsub.s32 0, %v162
  %v164 = vrot.slane %v77, %v163
  %v165 = vlaneseq
  %v166 = vshrl.u32 %v165, 7
  %v167 = vsub.s32 0, %v166
  %v168 = vrot.slane %v85, %v167
  %v169 = vlaneseq
  %v170 = vshrl.u32 %v169, 7
  %v171 = vsub.s32 0, %v170
  %v172 = vrot.slane %v87, %v171
  %v173 = vlaneseq
  %v174 = vshrl.u32 %v173, 7
  %v175 = vsub.s32 0, %v174
  %v176 = vrot.slane %v70, %v175
  %v177 = vlaneseq
  %v178 = vshrl.u32 %v177, 7
  %v179 = vsub.s32 0, %v178
  %v180 = vrot.slane %v84, %v179
  %v181 = vlaneseq
  %v182 = vshrl.u32 %v181, 7
  %v183 = vsub.s32 0, %v182
  %v184 = vrot.slane %v86, %v183
  %v185 = vlaneseq
  %v186 = vshrl.u32 %v185, 7
  %v187 = vsub.s32 0, %v186
  %v188 = vrot.slane %v88, %v187
  %v189 = vlaneseq
  %v190 = vshrl.u32 %v189, 7
  %v191 = vsub.s32 0, %v190
  %v192 = vrot.slane %v112, %v191
  %v193 = vlaneseq
  %v194 = vshrl.u32 %v193, 7
  %v195 = vsub.s32 0, %v194
  %v196 = vrot.slane %v126, %v195
  %v197 = vlaneseq
  %v198 = vshrl.u32 %v197, 7
  %v199 = vsub.s32 0, %v198
  %v200 = vrot.slane %v134, %v199
  %v201 = vlaneseq
  %v202 = vshrl.u32 %v201, 7
  %v203 = vsub.s32 0, %v202
  %v204 = vrot.slane %v136, %v203
  %v205 = vlaneseq
  %v206 = vshrl.u32 %v205, 7
  %v207 = vsub.s32 0, %v206
  %v208 = vrot.slane %v119, %v207
  %v209 = vlaneseq
  %v210 = vshrl.u32 %v209, 7
  %v211 = vsub.s32 0, %v210
  %v212 = vrot.slane %v133, %v211
  %v213 = vlaneseq
  %v214 = vshrl.u32 %v213, 7
  %v215 = vsub.s32 0, %v214
  %v216 = vrot.slane %v135, %v215
  %v217 = vlaneseq
  %v218 = vshrl.u32 %v217, 7
  %v219 = vsub.s32 0, %v218
  %v220 = vrot.slane %v137, %v219
  %v237 = vmul.f32 %v160, %v144
  %v238 = vmul.f32 %v160, %v148
  %v239 = vmul.f32 %v160, %v152
  %v240 = vmul.f32 %v160, %v156
  %v241 = vmul.f32 %v164, %v144
  %v242 = vmul.f32 %v164, %v148
  %v243 = vmul.f32 %v164, %v152
  %v244 = vmul.f32 %v164, %v156
  %v245 = vmul.f32 %v168, %v144
  %v246 = vmul.f32 %v168, %v148
  %v247 = vmul.f32 %v168, %v152
  %v248 = vmul.f32 %v168, %v156
  %v249 = vmul.f32 %v172, %v144
  %v250 = vmul.f32 %v172, %v148
  %v251 = vmul.f32 %v172, %v152
  %v252 = vmul.f32 %v172, %v156
  %v253 = vmul.f32 %v176, %v144
  %v254 = vmul.f32 %v176, %v148
  %v255 = vmul.f32 %v176, %v152
  %v256 = vmul.f32 %v176, %v156
  %v257 = vmul.f32 %v180, %v144
  %v258 = vmul.f32 %v180, %v148
  %v259 = vmul.f32 %v180, %v152
  %v260 = vmul.f32 %v180, %v156
  %v261 = vmul.f32 %v184, %v144
  %v262 = vmul.f32 %v184, %v148
  %v263 = vmul.f32 %v184, %v152
  %v264 = vmul.f32 %v184, %v156
  %v265 = vmul.f32 %v188, %v144
  %v266 = vmul.f32 %v188, %v148
  %v267 = vmul.f32 %v188, %v152
  %v268 = vmul.f32 %v188, %v156
  %v269 = vmul.f32 %v192, %v144
  %v270 = vmul.f32 %v192, %v148
  %v271 = vmul.f32 %v192, %v152
  %v272 = vmul.f32 %v192, %v156
  %v273 = vmul.f32 %v196, %v144
  %v274 = vmul.f32 %v196, %v148
  %v275 = vmul.f32 %v196, %v152
  %v276 = vmul.f32 %v196, %v156
  %v277 = vmul.f32 %v200, %v144
  %v278 = vmul.f32 %v200, %v148
  %v279 = vmul.f32 %v200, %v152
  %v280 = vmul.f32 %v200, %v156
  %v281 = vmul.f32 %v204, %v144
  %v282 = vmul.f32 %v204, %v148
  %v283 = vmul.f32 %v204, %v152
  %v284 = vmul.f32 %v204, %v156
  %v285 = vmul.f32 %v208, %v144
  %v286 = vmul.f32 %v208, %v148
  %v287 = vmul.f32 %v208, %v152
  %v288 = vmul.f32 %v208, %v156
  %v289 = vmul.f32 %v212, %v144
  %v290 = vmul.f32 %v212, %v148
  %v291 = vmul.f32 %v212, %v152
  %v292 = vmul.f32 %v212, %v156
  %v293 = vmul.f32 %v216, %v144
  %v294 = vmul.f32 %v216, %v148
  %v295 = vmul.f32 %v216, %v152
  %v296 = vmul.f32 %v216, %v156
  %v297 = vmul.f32 %v220, %v144
  %v298 = vmul.f32 %v220, %v148
  %v299 = vmul.f32 %v220, %v152
  %v300 = vmul.f32 %v220, %v156
  %v301 = vcombine.high %v20, %v20
  %v303 = vunpack.c.l.s4 1966171168
  %v304 = vunpack.c.0.s8 %v303
  %v305 = vlaneseq
  %v306 = vshrl.u32 %v305, 7
  %v307 = vsub.s32 %v304, %v306
  %v308 = vrot.slane %v20, %v307
  %v310 = vunpack.c.l.s4 1966171168
  %v311 = vunpack.c.0.s8 %v310
  %v312 = vlaneseq
  %v313 = vshrl.u32 %v312, 7
  %v314 = vsub.s32 %v311, %v313
  %v315 = vrot.slane %v301, %v314
  %v316 = vcombine.high %v308, %v308
  %v317 = vcombine.high %v315, %v315
  %v319 = vunpack.c.l.s4 1966171168
  %v320 = vunpack.c.0.s8 %v319
  %v321 = vlaneseq
  %v322 = vshrl.u32 %v321, 7
  %v323 = vsub.s32 %v320, %v322
  %v324 = vrot.slane %v308, %v323
  %v326 = vunpack.c.l.s4 1966171168
  %v327 = vunpack.c.0.s8 %v326
  %v328 = vlaneseq
  %v329 = vshrl.u32 %v328, 7
  %v330 = vsub.s32 %v327, %v329
  %v331 = vrot.slane %v315, %v330
  %v333 = vunpack.c.l.s4 1966171168
  %v334 = vunpack.c.0.s8 %v333
  %v335 = vlaneseq
  %v336 = vshrl.u32 %v335, 7
  %v337 = vsub.s32 %v334, %v336
  %v338 = vrot.slane %v316, %v337
  %v340 = vunpack.c.l.s4 1966171168
  %v341 = vunpack.c.0.s8 %v340
  %v342 = vlaneseq
  %v343 = vshrl.u32 %v342, 7
  %v344 = vsub.s32 %v341, %v343
  %v345 = vrot.slane %v317, %v344
  %v346 = vcombine.high %v324, %v324
  %v347 = vcombine.high %v331, %v331
  %v348 = vcombine.high %v338, %v338
  %v349 = vcombine.high %v345, %v345
  %v350 = vcombine.high %v21, %v21
  %v352 = vunpack.c.l.s4 1966171168
  %v353 = vunpack.c.0.s8 %v352
  %v354 = vlaneseq
  %v355 = vshrl.u32 %v354, 7
  %v356 = vsub.s32 %v353, %v355
  %v357 = vrot.slane %v21, %v356
  %v359 = vunpack.c.l.s4 1966171168
  %v360 = vunpack.c.0.s8 %v359
  %v361 = vlaneseq
  %v362 = vshrl.u32 %v361, 7
  %v363 = vsub.s32 %v360, %v362
  %v364 = vrot.slane %v350, %v363
  %v365 = vcombine.high %v357, %v357
  %v366 = vcombine.high %v364, %v364
  %v368 = vunpack.c.l.s4 1966171168
  %v369 = vunpack.c.0.s8 %v368
  %v370 = vlaneseq
  %v371 = vshrl.u32 %v370, 7
  %v372 = vsub.s32 %v369, %v371
  %v373 = vrot.slane %v357, %v372
  %v375 = vunpack.c.l.s4 1966171168
  %v376 = vunpack.c.0.s8 %v375
  %v377 = vlaneseq
  %v378 = vshrl.u32 %v377, 7
  %v379 = vsub.s32 %v376, %v378
  %v380 = vrot.slane %v364, %v379
  %v382 = vunpack.c.l.s4 1966171168
  %v383 = vunpack.c.0.s8 %v382
  %v384 = vlaneseq
  %v385 = vshrl.u32 %v384, 7
  %v386 = vsub.s32 %v383, %v385
  %v387 = vrot.slane %v365, %v386
  %v389 = vunpack.c.l.s4 1966171168
  %v390 = vunpack.c.0.s8 %v389
  %v391 = vlaneseq
  %v392 = vshrl.u32 %v391, 7
  %v393 = vsub.s32 %v390, %v392
  %v394 = vrot.slane %v366, %v393
  %v395 = vcombine.high %v373, %v373
  %v396 = vcombine.high %v380, %v380
  %v397 = vcombine.high %v387, %v387
  %v398 = vcombine.high %v394, %v394
  %v399 = vlaneseq
  %v400 = vshrl.u32 %v399, 7
  %v401 = vsub.s32 1, %v400
  %v402 = vrot.slane %v22, %v401
  %404 = vbcast.lane.b32.xlu0 %v402, 256
  %v405 = vpop.permute.xlu0 %404
  %s407 = sor.u32 256, 8
  %408 = vbcast.lane.b32.xlu0 %v402, %s407
  %v409 = vpop.permute.xlu0 %408
  %s411 = sor.u32 256, 16
  %412 = vbcast.lane.b32.xlu0 %v402, %s411
  %v413 = vpop.permute.xlu0 %412
  %s415 = sor.u32 256, 24
  %416 = vbcast.lane.b32.xlu0 %v402, %s415
  %v417 = vpop.permute.xlu0 %416
  %v418 = vlaneseq
  %v419 = vshrl.u32 %v418, 7
  %v420 = vsub.s32 0, %v419
  %v421 = vrot.slane %v324, %v420
  %v422 = vlaneseq
  %v423 = vshrl.u32 %v422, 7
  %v424 = vsub.s32 0, %v423
  %v425 = vrot.slane %v338, %v424
  %v426 = vlaneseq
  %v427 = vshrl.u32 %v426, 7
  %v428 = vsub.s32 0, %v427
  %v429 = vrot.slane %v346, %v428
  %v430 = vlaneseq
  %v431 = vshrl.u32 %v430, 7
  %v432 = vsub.s32 0, %v431
  %v433 = vrot.slane %v348, %v432
  %v434 = vlaneseq
  %v435 = vshrl.u32 %v434, 7
  %v436 = vsub.s32 0, %v435
  %v437 = vrot.slane %v331, %v436
  %v438 = vlaneseq
  %v439 = vshrl.u32 %v438, 7
  %v440 = vsub.s32 0, %v439
  %v441 = vrot.slane %v345, %v440
  %v442 = vlaneseq
  %v443 = vshrl.u32 %v442, 7
  %v444 = vsub.s32 0, %v443
  %v445 = vrot.slane %v347, %v444
  %v446 = vlaneseq
  %v447 = vshrl.u32 %v446, 7
  %v448 = vsub.s32 0, %v447
  %v449 = vrot.slane %v349, %v448
  %v450 = vlaneseq
  %v451 = vshrl.u32 %v450, 7
  %v452 = vsub.s32 0, %v451
  %v453 = vrot.slane %v373, %v452
  %v454 = vlaneseq
  %v455 = vshrl.u32 %v454, 7
  %v456 = vsub.s32 0, %v455
  %v457 = vrot.slane %v387, %v456
  %v458 = vlaneseq
  %v459 = vshrl.u32 %v458, 7
  %v460 = vsub.s32 0, %v459
  %v461 = vrot.slane %v395, %v460
  %v462 = vlaneseq
  %v463 = vshrl.u32 %v462, 7
  %v464 = vsub.s32 0, %v463
  %v465 = vrot.slane %v397, %v464
  %v466 = vlaneseq
  %v467 = vshrl.u32 %v466, 7
  %v468 = vsub.s32 0, %v467
  %v469 = vrot.slane %v380, %v468
  %v470 = vlaneseq
  %v471 = vshrl.u32 %v470, 7
  %v472 = vsub.s32 0, %v471
  %v473 = vrot.slane %v394, %v472
  %v474 = vlaneseq
  %v475 = vshrl.u32 %v474, 7
  %v476 = vsub.s32 0, %v475
  %v477 = vrot.slane %v396, %v476
  %v478 = vlaneseq
  %v479 = vshrl.u32 %v478, 7
  %v480 = vsub.s32 0, %v479
  %v481 = vrot.slane %v398, %v480
  %v498 = vmul.f32 %v421, %v405
  %v499 = vmul.f32 %v421, %v409
  %v500 = vmul.f32 %v421, %v413
  %v501 = vmul.f32 %v421, %v417
  %v502 = vmul.f32 %v425, %v405
  %v503 = vmul.f32 %v425, %v409
  %v504 = vmul.f32 %v425, %v413
  %v505 = vmul.f32 %v425, %v417
  %v506 = vmul.f32 %v429, %v405
  %v507 = vmul.f32 %v429, %v409
  %v508 = vmul.f32 %v429, %v413
  %v509 = vmul.f32 %v429, %v417
  %v510 = vmul.f32 %v433, %v405
  %v511 = vmul.f32 %v433, %v409
  %v512 = vmul.f32 %v433, %v413
  %v513 = vmul.f32 %v433, %v417
  %v514 = vmul.f32 %v437, %v405
  %v515 = vmul.f32 %v437, %v409
  %v516 = vmul.f32 %v437, %v413
  %v517 = vmul.f32 %v437, %v417
  %v518 = vmul.f32 %v441, %v405
  %v519 = vmul.f32 %v441, %v409
  %v520 = vmul.f32 %v441, %v413
  %v521 = vmul.f32 %v441, %v417
  %v522 = vmul.f32 %v445, %v405
  %v523 = vmul.f32 %v445, %v409
  %v524 = vmul.f32 %v445, %v413
  %v525 = vmul.f32 %v445, %v417
  %v526 = vmul.f32 %v449, %v405
  %v527 = vmul.f32 %v449, %v409
  %v528 = vmul.f32 %v449, %v413
  %v529 = vmul.f32 %v449, %v417
  %v530 = vmul.f32 %v453, %v405
  %v531 = vmul.f32 %v453, %v409
  %v532 = vmul.f32 %v453, %v413
  %v533 = vmul.f32 %v453, %v417
  %v534 = vmul.f32 %v457, %v405
  %v535 = vmul.f32 %v457, %v409
  %v536 = vmul.f32 %v457, %v413
  %v537 = vmul.f32 %v457, %v417
  %v538 = vmul.f32 %v461, %v405
  %v539 = vmul.f32 %v461, %v409
  %v540 = vmul.f32 %v461, %v413
  %v541 = vmul.f32 %v461, %v417
  %v542 = vmul.f32 %v465, %v405
  %v543 = vmul.f32 %v465, %v409
  %v544 = vmul.f32 %v465, %v413
  %v545 = vmul.f32 %v465, %v417
  %v546 = vmul.f32 %v469, %v405
  %v547 = vmul.f32 %v469, %v409
  %v548 = vmul.f32 %v469, %v413
  %v549 = vmul.f32 %v469, %v417
  %v550 = vmul.f32 %v473, %v405
  %v551 = vmul.f32 %v473, %v409
  %v552 = vmul.f32 %v473, %v413
  %v553 = vmul.f32 %v473, %v417
  %v554 = vmul.f32 %v477, %v405
  %v555 = vmul.f32 %v477, %v409
  %v556 = vmul.f32 %v477, %v413
  %v557 = vmul.f32 %v477, %v417
  %v558 = vmul.f32 %v481, %v405
  %v559 = vmul.f32 %v481, %v409
  %v560 = vmul.f32 %v481, %v413
  %v561 = vmul.f32 %v481, %v417
  %v562 = vadd.f32 %v237, %v498
  %v563 = vadd.f32 %v238, %v499
  %v564 = vadd.f32 %v239, %v500
  %v565 = vadd.f32 %v240, %v501
  %v566 = vadd.f32 %v241, %v502
  %v567 = vadd.f32 %v242, %v503
  %v568 = vadd.f32 %v243, %v504
  %v569 = vadd.f32 %v244, %v505
  %v570 = vadd.f32 %v245, %v506
  %v571 = vadd.f32 %v246, %v507
  %v572 = vadd.f32 %v247, %v508
  %v573 = vadd.f32 %v248, %v509
  %v574 = vadd.f32 %v249, %v510
  %v575 = vadd.f32 %v250, %v511
  %v576 = vadd.f32 %v251, %v512
  %v577 = vadd.f32 %v252, %v513
  %v578 = vadd.f32 %v253, %v514
  %v579 = vadd.f32 %v254, %v515
  %v580 = vadd.f32 %v255, %v516
  %v581 = vadd.f32 %v256, %v517
  %v582 = vadd.f32 %v257, %v518
  %v583 = vadd.f32 %v258, %v519
  %v584 = vadd.f32 %v259, %v520
  %v585 = vadd.f32 %v260, %v521
  %v586 = vadd.f32 %v261, %v522
  %v587 = vadd.f32 %v262, %v523
  %v588 = vadd.f32 %v263, %v524
  %v589 = vadd.f32 %v264, %v525
  %v590 = vadd.f32 %v265, %v526
  %v591 = vadd.f32 %v266, %v527
  %v592 = vadd.f32 %v267, %v528
  %v593 = vadd.f32 %v268, %v529
  %v594 = vadd.f32 %v269, %v530
  %v595 = vadd.f32 %v270, %v531
  %v596 = vadd.f32 %v271, %v532
  %v597 = vadd.f32 %v272, %v533
  %v598 = vadd.f32 %v273, %v534
  %v599 = vadd.f32 %v274, %v535
  %v600 = vadd.f32 %v275, %v536
  %v601 = vadd.f32 %v276, %v537
  %v602 = vadd.f32 %v277, %v538
  %v603 = vadd.f32 %v278, %v539
  %v604 = vadd.f32 %v279, %v540
  %v605 = vadd.f32 %v280, %v541
  %v606 = vadd.f32 %v281, %v542
  %v607 = vadd.f32 %v282, %v543
  %v608 = vadd.f32 %v283, %v544
  %v609 = vadd.f32 %v284, %v545
  %v610 = vadd.f32 %v285, %v546
  %v611 = vadd.f32 %v286, %v547
  %v612 = vadd.f32 %v287, %v548
  %v613 = vadd.f32 %v288, %v549
  %v614 = vadd.f32 %v289, %v550
  %v615 = vadd.f32 %v290, %v551
  %v616 = vadd.f32 %v291, %v552
  %v617 = vadd.f32 %v292, %v553
  %v618 = vadd.f32 %v293, %v554
  %v619 = vadd.f32 %v294, %v555
  %v620 = vadd.f32 %v295, %v556
  %v621 = vadd.f32 %v296, %v557
  %v622 = vadd.f32 %v297, %v558
  %v623 = vadd.f32 %v298, %v559
  %v624 = vadd.f32 %v299, %v560
  %v625 = vadd.f32 %v300, %v561
  %v627 = vcombine.high %v36, %v36
  %v629 = vunpack.c.l.s4 1966171168
  %v630 = vunpack.c.0.s8 %v629
  %v631 = vlaneseq
  %v632 = vshrl.u32 %v631, 7
  %v633 = vsub.s32 %v630, %v632
  %v634 = vrot.slane %v36, %v633
  %v636 = vunpack.c.l.s4 1966171168
  %v637 = vunpack.c.0.s8 %v636
  %v638 = vlaneseq
  %v639 = vshrl.u32 %v638, 7
  %v640 = vsub.s32 %v637, %v639
  %v641 = vrot.slane %v627, %v640
  %v642 = vcombine.high %v634, %v634
  %v643 = vcombine.high %v641, %v641
  %v645 = vunpack.c.l.s4 1966171168
  %v646 = vunpack.c.0.s8 %v645
  %v647 = vlaneseq
  %v648 = vshrl.u32 %v647, 7
  %v649 = vsub.s32 %v646, %v648
  %v650 = vrot.slane %v634, %v649
  %v652 = vunpack.c.l.s4 1966171168
  %v653 = vunpack.c.0.s8 %v652
  %v654 = vlaneseq
  %v655 = vshrl.u32 %v654, 7
  %v656 = vsub.s32 %v653, %v655
  %v657 = vrot.slane %v641, %v656
  %v659 = vunpack.c.l.s4 1966171168
  %v660 = vunpack.c.0.s8 %v659
  %v661 = vlaneseq
  %v662 = vshrl.u32 %v661, 7
  %v663 = vsub.s32 %v660, %v662
  %v664 = vrot.slane %v642, %v663
  %v666 = vunpack.c.l.s4 1966171168
  %v667 = vunpack.c.0.s8 %v666
  %v668 = vlaneseq
  %v669 = vshrl.u32 %v668, 7
  %v670 = vsub.s32 %v667, %v669
  %v671 = vrot.slane %v643, %v670
  %v672 = vcombine.high %v650, %v650
  %v673 = vcombine.high %v657, %v657
  %v674 = vcombine.high %v664, %v664
  %v675 = vcombine.high %v671, %v671
  %v676 = vcombine.high %v38, %v38
  %v678 = vunpack.c.l.s4 1966171168
  %v679 = vunpack.c.0.s8 %v678
  %v680 = vlaneseq
  %v681 = vshrl.u32 %v680, 7
  %v682 = vsub.s32 %v679, %v681
  %v683 = vrot.slane %v38, %v682
  %v685 = vunpack.c.l.s4 1966171168
  %v686 = vunpack.c.0.s8 %v685
  %v687 = vlaneseq
  %v688 = vshrl.u32 %v687, 7
  %v689 = vsub.s32 %v686, %v688
  %v690 = vrot.slane %v676, %v689
  %v691 = vcombine.high %v683, %v683
  %v692 = vcombine.high %v690, %v690
  %v694 = vunpack.c.l.s4 1966171168
  %v695 = vunpack.c.0.s8 %v694
  %v696 = vlaneseq
  %v697 = vshrl.u32 %v696, 7
  %v698 = vsub.s32 %v695, %v697
  %v699 = vrot.slane %v683, %v698
  %v701 = vunpack.c.l.s4 1966171168
  %v702 = vunpack.c.0.s8 %v701
  %v703 = vlaneseq
  %v704 = vshrl.u32 %v703, 7
  %v705 = vsub.s32 %v702, %v704
  %v706 = vrot.slane %v690, %v705
  %v708 = vunpack.c.l.s4 1966171168
  %v709 = vunpack.c.0.s8 %v708
  %v710 = vlaneseq
  %v711 = vshrl.u32 %v710, 7
  %v712 = vsub.s32 %v709, %v711
  %v713 = vrot.slane %v691, %v712
  %v715 = vunpack.c.l.s4 1966171168
  %v716 = vunpack.c.0.s8 %v715
  %v717 = vlaneseq
  %v718 = vshrl.u32 %v717, 7
  %v719 = vsub.s32 %v716, %v718
  %v720 = vrot.slane %v692, %v719
  %v721 = vcombine.high %v699, %v699
  %v722 = vcombine.high %v706, %v706
  %v723 = vcombine.high %v713, %v713
  %v724 = vcombine.high %v720, %v720
  %v725 = vlaneseq
  %v726 = vshrl.u32 %v725, 7
  %v727 = vsub.s32 2, %v726
  %v728 = vrot.slane %v22, %v727
  %730 = vbcast.lane.b32.xlu0 %v728, 256
  %v731 = vpop.permute.xlu0 %730
  %s733 = sor.u32 256, 8
  %734 = vbcast.lane.b32.xlu0 %v728, %s733
  %v735 = vpop.permute.xlu0 %734
  %s737 = sor.u32 256, 16
  %738 = vbcast.lane.b32.xlu0 %v728, %s737
  %v739 = vpop.permute.xlu0 %738
  %s741 = sor.u32 256, 24
  %742 = vbcast.lane.b32.xlu0 %v728, %s741
  %v743 = vpop.permute.xlu0 %742
  %v744 = vlaneseq
  %v745 = vshrl.u32 %v744, 7
  %v746 = vsub.s32 0, %v745
  %v747 = vrot.slane %v650, %v746
  %v748 = vlaneseq
  %v749 = vshrl.u32 %v748, 7
  %v750 = vsub.s32 0, %v749
  %v751 = vrot.slane %v664, %v750
  %v752 = vlaneseq
  %v753 = vshrl.u32 %v752, 7
  %v754 = vsub.s32 0, %v753
  %v755 = vrot.slane %v672, %v754
  %v756 = vlaneseq
  %v757 = vshrl.u32 %v756, 7
  %v758 = vsub.s32 0, %v757
  %v759 = vrot.slane %v674, %v758
  %v760 = vlaneseq
  %v761 = vshrl.u32 %v760, 7
  %v762 = vsub.s32 0, %v761
  %v763 = vrot.slane %v657, %v762
  %v764 = vlaneseq
  %v765 = vshrl.u32 %v764, 7
  %v766 = vsub.s32 0, %v765
  %v767 = vrot.slane %v671, %v766
  %v768 = vlaneseq
  %v769 = vshrl.u32 %v768, 7
  %v770 = vsub.s32 0, %v769
  %v771 = vrot.slane %v673, %v770
  %v772 = vlaneseq
  %v773 = vshrl.u32 %v772, 7
  %v774 = vsub.s32 0, %v773
  %v775 = vrot.slane %v675, %v774
  %v776 = vlaneseq
  %v777 = vshrl.u32 %v776, 7
  %v778 = vsub.s32 0, %v777
  %v779 = vrot.slane %v699, %v778
  %v780 = vlaneseq
  %v781 = vshrl.u32 %v780, 7
  %v782 = vsub.s32 0, %v781
  %v783 = vrot.slane %v713, %v782
  %v784 = vlaneseq
  %v785 = vshrl.u32 %v784, 7
  %v786 = vsub.s32 0, %v785
  %v787 = vrot.slane %v721, %v786
  %v788 = vlaneseq
  %v789 = vshrl.u32 %v788, 7
  %v790 = vsub.s32 0, %v789
  %v791 = vrot.slane %v723, %v790
  %v792 = vlaneseq
  %v793 = vshrl.u32 %v792, 7
  %v794 = vsub.s32 0, %v793
  %v795 = vrot.slane %v706, %v794
  %v796 = vlaneseq
  %v797 = vshrl.u32 %v796, 7
  %v798 = vsub.s32 0, %v797
  %v799 = vrot.slane %v720, %v798
  %v800 = vlaneseq
  %v801 = vshrl.u32 %v800, 7
  %v802 = vsub.s32 0, %v801
  %v803 = vrot.slane %v722, %v802
  %v804 = vlaneseq
  %v805 = vshrl.u32 %v804, 7
  %v806 = vsub.s32 0, %v805
  %v807 = vrot.slane %v724, %v806
  %v824 = vmul.f32 %v747, %v731
  %v825 = vmul.f32 %v747, %v735
  %v826 = vmul.f32 %v747, %v739
  %v827 = vmul.f32 %v747, %v743
  %v828 = vmul.f32 %v751, %v731
  %v829 = vmul.f32 %v751, %v735
  %v830 = vmul.f32 %v751, %v739
  %v831 = vmul.f32 %v751, %v743
  %v832 = vmul.f32 %v755, %v731
  %v833 = vmul.f32 %v755, %v735
  %v834 = vmul.f32 %v755, %v739
  %v835 = vmul.f32 %v755, %v743
  %v836 = vmul.f32 %v759, %v731
  %v837 = vmul.f32 %v759, %v735
  %v838 = vmul.f32 %v759, %v739
  %v839 = vmul.f32 %v759, %v743
  %v840 = vmul.f32 %v763, %v731
  %v841 = vmul.f32 %v763, %v735
  %v842 = vmul.f32 %v763, %v739
  %v843 = vmul.f32 %v763, %v743
  %v844 = vmul.f32 %v767, %v731
  %v845 = vmul.f32 %v767, %v735
  %v846 = vmul.f32 %v767, %v739
  %v847 = vmul.f32 %v767, %v743
  %v848 = vmul.f32 %v771, %v731
  %v849 = vmul.f32 %v771, %v735
  %v850 = vmul.f32 %v771, %v739
  %v851 = vmul.f32 %v771, %v743
  %v852 = vmul.f32 %v775, %v731
  %v853 = vmul.f32 %v775, %v735
  %v854 = vmul.f32 %v775, %v739
  %v855 = vmul.f32 %v775, %v743
  %v856 = vmul.f32 %v779, %v731
  %v857 = vmul.f32 %v779, %v735
  %v858 = vmul.f32 %v779, %v739
  %v859 = vmul.f32 %v779, %v743
  %v860 = vmul.f32 %v783, %v731
  %v861 = vmul.f32 %v783, %v735
  %v862 = vmul.f32 %v783, %v739
  %v863 = vmul.f32 %v783, %v743
  %v864 = vmul.f32 %v787, %v731
  %v865 = vmul.f32 %v787, %v735
  %v866 = vmul.f32 %v787, %v739
  %v867 = vmul.f32 %v787, %v743
  %v868 = vmul.f32 %v791, %v731
  %v869 = vmul.f32 %v791, %v735
  %v870 = vmul.f32 %v791, %v739
  %v871 = vmul.f32 %v791, %v743
  %v872 = vmul.f32 %v795, %v731
  %v873 = vmul.f32 %v795, %v735
  %v874 = vmul.f32 %v795, %v739
  %v875 = vmul.f32 %v795, %v743
  %v876 = vmul.f32 %v799, %v731
  %v877 = vmul.f32 %v799, %v735
  %v878 = vmul.f32 %v799, %v739
  %v879 = vmul.f32 %v799, %v743
  %v880 = vmul.f32 %v803, %v731
  %v881 = vmul.f32 %v803, %v735
  %v882 = vmul.f32 %v803, %v739
  %v883 = vmul.f32 %v803, %v743
  %v884 = vmul.f32 %v807, %v731
  %v885 = vmul.f32 %v807, %v735
  %v886 = vmul.f32 %v807, %v739
  %v887 = vmul.f32 %v807, %v743
  %v888 = vadd.f32 %v562, %v824
  %v889 = vadd.f32 %v563, %v825
  %v890 = vadd.f32 %v564, %v826
  %v891 = vadd.f32 %v565, %v827
  %v892 = vadd.f32 %v566, %v828
  %v893 = vadd.f32 %v567, %v829
  %v894 = vadd.f32 %v568, %v830
  %v895 = vadd.f32 %v569, %v831
  %v896 = vadd.f32 %v570, %v832
  %v897 = vadd.f32 %v571, %v833
  %v898 = vadd.f32 %v572, %v834
  %v899 = vadd.f32 %v573, %v835
  %v900 = vadd.f32 %v574, %v836
  %v901 = vadd.f32 %v575, %v837
  %v902 = vadd.f32 %v576, %v838
  %v903 = vadd.f32 %v577, %v839
  %v904 = vadd.f32 %v578, %v840
  %v905 = vadd.f32 %v579, %v841
  %v906 = vadd.f32 %v580, %v842
  %v907 = vadd.f32 %v581, %v843
  %v908 = vadd.f32 %v582, %v844
  %v909 = vadd.f32 %v583, %v845
  %v910 = vadd.f32 %v584, %v846
  %v911 = vadd.f32 %v585, %v847
  %v912 = vadd.f32 %v586, %v848
  %v913 = vadd.f32 %v587, %v849
  %v914 = vadd.f32 %v588, %v850
  %v915 = vadd.f32 %v589, %v851
  %v916 = vadd.f32 %v590, %v852
  %v917 = vadd.f32 %v591, %v853
  %v918 = vadd.f32 %v592, %v854
  %v919 = vadd.f32 %v593, %v855
  %v920 = vadd.f32 %v594, %v856
  %v921 = vadd.f32 %v595, %v857
  %v922 = vadd.f32 %v596, %v858
  %v923 = vadd.f32 %v597, %v859
  %v924 = vadd.f32 %v598, %v860
  %v925 = vadd.f32 %v599, %v861
  %v926 = vadd.f32 %v600, %v862
  %v927 = vadd.f32 %v601, %v863
  %v928 = vadd.f32 %v602, %v864
  %v929 = vadd.f32 %v603, %v865
  %v930 = vadd.f32 %v604, %v866
  %v931 = vadd.f32 %v605, %v867
  %v932 = vadd.f32 %v606, %v868
  %v933 = vadd.f32 %v607, %v869
  %v934 = vadd.f32 %v608, %v870
  %v935 = vadd.f32 %v609, %v871
  %v936 = vadd.f32 %v610, %v872
  %v937 = vadd.f32 %v611, %v873
  %v938 = vadd.f32 %v612, %v874
  %v939 = vadd.f32 %v613, %v875
  %v940 = vadd.f32 %v614, %v876
  %v941 = vadd.f32 %v615, %v877
  %v942 = vadd.f32 %v616, %v878
  %v943 = vadd.f32 %v617, %v879
  %v944 = vadd.f32 %v618, %v880
  %v945 = vadd.f32 %v619, %v881
  %v946 = vadd.f32 %v620, %v882
  %v947 = vadd.f32 %v621, %v883
  %v948 = vadd.f32 %v622, %v884
  %v949 = vadd.f32 %v623, %v885
  %v950 = vadd.f32 %v624, %v886
  %v951 = vadd.f32 %v625, %v887
  %v952 = vlaneseq
  %v953 = vshrl.u32 %v952, 7
  %v954 = vsub.s32 0, %v953
  %v955 = vrot.slane %v23, %v954
  %957 = vbcast.lane.b32.xlu0 %v955, 256
  %v958 = vpop.permute.xlu0 %957
  %s960 = sor.u32 256, 8
  %961 = vbcast.lane.b32.xlu0 %v955, %s960
  %v962 = vpop.permute.xlu0 %961
  %s964 = sor.u32 256, 16
  %965 = vbcast.lane.b32.xlu0 %v955, %s964
  %v966 = vpop.permute.xlu0 %965
  %s968 = sor.u32 256, 24
  %969 = vbcast.lane.b32.xlu0 %v955, %s968
  %v970 = vpop.permute.xlu0 %969
  %v971 = vadd.f32 %v888, %v958
  %v972 = vadd.f32 %v889, %v962
  %v973 = vadd.f32 %v890, %v966
  %v974 = vadd.f32 %v891, %v970
  %v975 = vadd.f32 %v892, %v958
  %v976 = vadd.f32 %v893, %v962
  %v977 = vadd.f32 %v894, %v966
  %v978 = vadd.f32 %v895, %v970
  %v979 = vadd.f32 %v896, %v958
  %v980 = vadd.f32 %v897, %v962
  %v981 = vadd.f32 %v898, %v966
  %v982 = vadd.f32 %v899, %v970
  %v983 = vadd.f32 %v900, %v958
  %v984 = vadd.f32 %v901, %v962
  %v985 = vadd.f32 %v902, %v966
  %v986 = vadd.f32 %v903, %v970
  %v987 = vadd.f32 %v904, %v958
  %v988 = vadd.f32 %v905, %v962
  %v989 = vadd.f32 %v906, %v966
  %v990 = vadd.f32 %v907, %v970
  %v991 = vadd.f32 %v908, %v958
  %v992 = vadd.f32 %v909, %v962
  %v993 = vadd.f32 %v910, %v966
  %v994 = vadd.f32 %v911, %v970
  %v995 = vadd.f32 %v912, %v958
  %v996 = vadd.f32 %v913, %v962
  %v997 = vadd.f32 %v914, %v966
  %v998 = vadd.f32 %v915, %v970
  %v999 = vadd.f32 %v916, %v958
  %v1000 = vadd.f32 %v917, %v962
  %v1001 = vadd.f32 %v918, %v966
  %v1002 = vadd.f32 %v919, %v970
  %v1003 = vadd.f32 %v920, %v958
  %v1004 = vadd.f32 %v921, %v962
  %v1005 = vadd.f32 %v922, %v966
  %v1006 = vadd.f32 %v923, %v970
  %v1007 = vadd.f32 %v924, %v958
  %v1008 = vadd.f32 %v925, %v962
  %v1009 = vadd.f32 %v926, %v966
  %v1010 = vadd.f32 %v927, %v970
  %v1011 = vadd.f32 %v928, %v958
  %v1012 = vadd.f32 %v929, %v962
  %v1013 = vadd.f32 %v930, %v966
  %v1014 = vadd.f32 %v931, %v970
  %v1015 = vadd.f32 %v932, %v958
  %v1016 = vadd.f32 %v933, %v962
  %v1017 = vadd.f32 %v934, %v966
  %v1018 = vadd.f32 %v935, %v970
  %v1019 = vadd.f32 %v936, %v958
  %v1020 = vadd.f32 %v937, %v962
  %v1021 = vadd.f32 %v938, %v966
  %v1022 = vadd.f32 %v939, %v970
  %v1023 = vadd.f32 %v940, %v958
  %v1024 = vadd.f32 %v941, %v962
  %v1025 = vadd.f32 %v942, %v966
  %v1026 = vadd.f32 %v943, %v970
  %v1027 = vadd.f32 %v944, %v958
  %v1028 = vadd.f32 %v945, %v962
  %v1029 = vadd.f32 %v946, %v966
  %v1030 = vadd.f32 %v947, %v970
  %v1031 = vadd.f32 %v948, %v958
  %v1032 = vadd.f32 %v949, %v962
  %v1033 = vadd.f32 %v950, %v966
  %v1034 = vadd.f32 %v951, %v970
  %v1035 = vmax.f32 %v971, 0.0
  %v1036 = vmax.f32 %v972, 0.0
  %v1037 = vmax.f32 %v973, 0.0
  %v1038 = vmax.f32 %v974, 0.0
  %v1039 = vmax.f32 %v975, 0.0
  %v1040 = vmax.f32 %v976, 0.0
  %v1041 = vmax.f32 %v977, 0.0
  %v1042 = vmax.f32 %v978, 0.0
  %v1043 = vmax.f32 %v979, 0.0
  %v1044 = vmax.f32 %v980, 0.0
  %v1045 = vmax.f32 %v981, 0.0
  %v1046 = vmax.f32 %v982, 0.0
  %v1047 = vmax.f32 %v983, 0.0
  %v1048 = vmax.f32 %v984, 0.0
  %v1049 = vmax.f32 %v985, 0.0
  %v1050 = vmax.f32 %v986, 0.0
  %v1051 = vmax.f32 %v987, 0.0
  %v1052 = vmax.f32 %v988, 0.0
  %v1053 = vmax.f32 %v989, 0.0
  %v1054 = vmax.f32 %v990, 0.0
  %v1055 = vmax.f32 %v991, 0.0
  %v1056 = vmax.f32 %v992, 0.0
  %v1057 = vmax.f32 %v993, 0.0
  %v1058 = vmax.f32 %v994, 0.0
  %v1059 = vmax.f32 %v995, 0.0
  %v1060 = vmax.f32 %v996, 0.0
  %v1061 = vmax.f32 %v997, 0.0
  %v1062 = vmax.f32 %v998, 0.0
  %v1063 = vmax.f32 %v999, 0.0
  %v1064 = vmax.f32 %v1000, 0.0
  %v1065 = vmax.f32 %v1001, 0.0
  %v1066 = vmax.f32 %v1002, 0.0
  %v1067 = vmax.f32 %v1003, 0.0
  %v1068 = vmax.f32 %v1004, 0.0
  %v1069 = vmax.f32 %v1005, 0.0
  %v1070 = vmax.f32 %v1006, 0.0
  %v1071 = vmax.f32 %v1007, 0.0
  %v1072 = vmax.f32 %v1008, 0.0
  %v1073 = vmax.f32 %v1009, 0.0
  %v1074 = vmax.f32 %v1010, 0.0
  %v1075 = vmax.f32 %v1011, 0.0
  %v1076 = vmax.f32 %v1012, 0.0
  %v1077 = vmax.f32 %v1013, 0.0
  %v1078 = vmax.f32 %v1014, 0.0
  %v1079 = vmax.f32 %v1015, 0.0
  %v1080 = vmax.f32 %v1016, 0.0
  %v1081 = vmax.f32 %v1017, 0.0
  %v1082 = vmax.f32 %v1018, 0.0
  %v1083 = vmax.f32 %v1019, 0.0
  %v1084 = vmax.f32 %v1020, 0.0
  %v1085 = vmax.f32 %v1021, 0.0
  %v1086 = vmax.f32 %v1022, 0.0
  %v1087 = vmax.f32 %v1023, 0.0
  %v1088 = vmax.f32 %v1024, 0.0
  %v1089 = vmax.f32 %v1025, 0.0
  %v1090 = vmax.f32 %v1026, 0.0
  %v1091 = vmax.f32 %v1027, 0.0
  %v1092 = vmax.f32 %v1028, 0.0
  %v1093 = vmax.f32 %v1029, 0.0
  %v1094 = vmax.f32 %v1030, 0.0
  %v1095 = vmax.f32 %v1031, 0.0
  %v1096 = vmax.f32 %v1032, 0.0
  %v1097 = vmax.f32 %v1033, 0.0
  %v1098 = vmax.f32 %v1034, 0.0
  %v1099 = vmax.f32 %v1039, %v1043
  %v1100 = vmax.f32 %v1040, %v1044
  %v1101 = vmax.f32 %v1041, %v1045
  %v1102 = vmax.f32 %v1042, %v1046
  %v1103 = vmax.f32 %v1047, %v1051
  %v1104 = vmax.f32 %v1048, %v1052
  %v1105 = vmax.f32 %v1049, %v1053
  %v1106 = vmax.f32 %v1050, %v1054
  %v1107 = vmax.f32 %v1055, %v1059
  %v1108 = vmax.f32 %v1056, %v1060
  %v1109 = vmax.f32 %v1057, %v1061
  %v1110 = vmax.f32 %v1058, %v1062
  %v1111 = vmax.f32 %v1063, %v1067
  %v1112 = vmax.f32 %v1064, %v1068
  %v1113 = vmax.f32 %v1065, %v1069
  %v1114 = vmax.f32 %v1066, %v1070
  %v1115 = vmax.f32 %v1071, %v1075
  %v1116 = vmax.f32 %v1072, %v1076
  %v1117 = vmax.f32 %v1073, %v1077
  %v1118 = vmax.f32 %v1074, %v1078
  %v1119 = vmax.f32 %v1079, %v1083
  %v1120 = vmax.f32 %v1080, %v1084
  %v1121 = vmax.f32 %v1081, %v1085
  %v1122 = vmax.f32 %v1082, %v1086
  %v1123 = vmax.f32 %v1087, %v1091
  %v1124 = vmax.f32 %v1088, %v1092
  %v1125 = vmax.f32 %v1089, %v1093
  %v1126 = vmax.f32 %v1090, %v1094
  %v1127 = vld [vmem:[%s3] sm:$0xff]
  %v1128 = vld [vmem:[%s3 + $0x8] sm:$0xff]
  %v1129 = vld [vmem:[%s3 + $0x10] sm:$0xff]
  %v1130 = vld [vmem:[%s3 + $0x18] sm:$0xff]
  %v1131 = vld [vmem:[%s3 + $0x20] sm:$0xff]
  %v1132 = vld [vmem:[%s3 + $0x28] sm:$0xff]
  %v1133 = vld [vmem:[%s3 + $0x30] sm:$0xff]
  %v1134 = vld [vmem:[%s3 + $0x38] sm:$0xff]
  %v1135 = vld [vmem:[%s3 + $0x40] sm:$0xff]
  %v1136 = vld [vmem:[%s3 + $0x48] sm:$0xff]
  %v1137 = vld [vmem:[%s3 + $0x50] sm:$0xff]
  %v1138 = vld [vmem:[%s3 + $0x58] sm:$0xff]
  %v1139 = vld [vmem:[%s3 + $0x60] sm:$0xff]
  %v1140 = vld [vmem:[%s3 + $0x68] sm:$0xff]
  %v1141 = vld [vmem:[%s3 + $0x70] sm:$0xff]
  %v1142 = vld [vmem:[%s3 + $0x78] sm:$0xff]
  %v1143 = vld [vmem:[%s3 + $0x80] sm:$0xff]
  %v1144 = vld [vmem:[%s3 + $0x88] sm:$0xff]
  %v1145 = vld [vmem:[%s3 + $0x90] sm:$0xff]
  %v1146 = vld [vmem:[%s3 + $0x98] sm:$0xff]
  %v1147 = vld [vmem:[%s3 + $0xa0] sm:$0xff]
  %v1148 = vld [vmem:[%s3 + $0xa8] sm:$0xff]
  %v1149 = vld [vmem:[%s3 + $0xb0] sm:$0xff]
  %v1150 = vld [vmem:[%s3 + $0xb8] sm:$0xff]
  %v1151 = vld [vmem:[%s3 + $0xc0] sm:$0xff]
  %v1152 = vld [vmem:[%s3 + $0xc8] sm:$0xff]
  %v1153 = vld [vmem:[%s3 + $0xd0] sm:$0xff]
  %v1154 = vld [vmem:[%s3 + $0xd8] sm:$0xff]
  %v1155 = vld [vmem:[%s3 + $0xe0] sm:$0xff]
  %v1156 = vld [vmem:[%s3 + $0xe8] sm:$0xff]
  %v1157 = vld [vmem:[%s3 + $0xf0] sm:$0xff]
  %v1158 = vld [vmem:[%s3 + $0xf8] sm:$0xff]
  %v1159 = vld [vmem:[%s3 + $0x100] sm:$0xff]
  %v1160 = vld [vmem:[%s3 + $0x108] sm:$0xff]
  %v1161 = vld [vmem:[%s3 + $0x110] sm:$0xff]
  %v1162 = vld [vmem:[%s3 + $0x118] sm:$0xff]
  %v1163 = vld [vmem:[%s3 + $0x120] sm:$0xff]
  %v1164 = vld [vmem:[%s3 + $0x128] sm:$0xff]
  %v1165 = vld [vmem:[%s3 + $0x130] sm:$0xff]
  %v1166 = vld [vmem:[%s3 + $0x138] sm:$0xff]
  %v1167 = vld [vmem:[%s3 + $0x140] sm:$0xff]
  %v1168 = vld [vmem:[%s3 + $0x148] sm:$0xff]
  %v1169 = vld [vmem:[%s3 + $0x150] sm:$0xff]
  %v1170 = vld [vmem:[%s3 + $0x158] sm:$0xff]
  %v1171 = vld [vmem:[%s3 + $0x160] sm:$0xff]
  %v1172 = vld [vmem:[%s3 + $0x168] sm:$0xff]
  %v1173 = vld [vmem:[%s3 + $0x170] sm:$0xff]
  %v1174 = vld [vmem:[%s3 + $0x178] sm:$0xff]
  %v1175 = vld [vmem:[%s3 + $0x180] sm:$0xff]
  %v1176 = vld [vmem:[%s3 + $0x188] sm:$0xff]
  %v1177 = vld [vmem:[%s3 + $0x190] sm:$0xff]
  %v1178 = vld [vmem:[%s3 + $0x198] sm:$0xff]
  %v1179 = vld [vmem:[%s3 + $0x1a0] sm:$0xff]
  %v1180 = vld [vmem:[%s3 + $0x1a8] sm:$0xff]
  %v1181 = vld [vmem:[%s3 + $0x1b0] sm:$0xff]
  %v1182 = vld [vmem:[%s3 + $0x1b8] sm:$0xff]
  %v1183 = vld [vmem:[%s3 + $0x1c0] sm:$0xff]
  %v1184 = vld [vmem:[%s3 + $0x1c8] sm:$0xff]
  %v1185 = vld [vmem:[%s3 + $0x1d0] sm:$0xff]
  %v1186 = vld [vmem:[%s3 + $0x1d8] sm:$0xff]
  %v1187 = vld [vmem:[%s3 + $0x1e0] sm:$0xff]
  %v1188 = vld [vmem:[%s3 + $0x1e8] sm:$0xff]
  %v1189 = vld [vmem:[%s3 + $0x1f0] sm:$0xff]
  %v1190 = vld [vmem:[%s3 + $0x1f8] sm:$0xff]
  %v1191 = vld [vmem:[%s3 + $0x200] sm:$0xff]
  %v1192 = vld [vmem:[%s3 + $0x208] sm:$0xff]
  %v1193 = vld [vmem:[%s3 + $0x210] sm:$0xff]
  %v1194 = vld [vmem:[%s3 + $0x218] sm:$0xff]
  %v1195 = vld [vmem:[%s3 + $0x220] sm:$0xff]
  %v1196 = vld [vmem:[%s3 + $0x228] sm:$0xff]
  %v1197 = vld [vmem:[%s3 + $0x230] sm:$0xff]
  %v1198 = vld [vmem:[%s3 + $0x238] sm:$0xff]
  %v1199 = vld [vmem:[%s3 + $0x240] sm:$0xff]
  %v1200 = vld [vmem:[%s3 + $0x248] sm:$0xff]
  %v1201 = vld [vmem:[%s3 + $0x250] sm:$0xff]
  %v1202 = vld [vmem:[%s3 + $0x258] sm:$0xff]
  %v1203 = vld [vmem:[%s3 + $0x260] sm:$0xff]
  %v1204 = vld [vmem:[%s3 + $0x268] sm:$0xff]
  %v1205 = vld [vmem:[%s3 + $0x270] sm:$0xff]
  %v1206 = vld [vmem:[%s3 + $0x278] sm:$0xff]
  %v1207 = vld [vmem:[%s3 + $0x280] sm:$0xff]
  %v1208 = vld [vmem:[%s3 + $0x288] sm:$0xff]
  %v1209 = vld [vmem:[%s3 + $0x290] sm:$0xff]
  %v1210 = vld [vmem:[%s3 + $0x298] sm:$0xff]
  %v1211 = vld [vmem:[%s3 + $0x2a0] sm:$0xff]
  %v1212 = vld [vmem:[%s3 + $0x2a8] sm:$0xff]
  %v1213 = vld [vmem:[%s3 + $0x2b0] sm:$0xff]
  %v1214 = vld [vmem:[%s3 + $0x2b8] sm:$0xff]
  %v1215 = vld [vmem:[%s3 + $0x2c0] sm:$0xff]
  %v1216 = vld [vmem:[%s3 + $0x2c8] sm:$0xff]
  %v1217 = vld [vmem:[%s3 + $0x2d0] sm:$0xff]
  %v1218 = vld [vmem:[%s3 + $0x2d8] sm:$0xff]
  %v1219 = vld [vmem:[%s3 + $0x2e0] sm:$0xff]
  %v1220 = vld [vmem:[%s3 + $0x2e8] sm:$0xff]
  %v1221 = vld [vmem:[%s3 + $0x2f0] sm:$0xff]
  %v1222 = vld [vmem:[%s3 + $0x2f8] sm:$0xff]
  %v1223 = vld [vmem:[%s3 + $0x300] sm:$0xff]
  %v1224 = vld [vmem:[%s3 + $0x308] sm:$0xff]
  %v1225 = vld [vmem:[%s3 + $0x310] sm:$0xff]
  %v1226 = vld [vmem:[%s3 + $0x318] sm:$0xff]
  %v1227 = vld [vmem:[%s3 + $0x320] sm:$0xff]
  %v1228 = vld [vmem:[%s3 + $0x328] sm:$0xff]
  %v1229 = vld [vmem:[%s3 + $0x330] sm:$0xff]
  %v1230 = vld [vmem:[%s3 + $0x338] sm:$0xff]
  %v1231 = vld [vmem:[%s3 + $0x340] sm:$0xff]
  %v1232 = vld [vmem:[%s3 + $0x348] sm:$0xff]
  %v1233 = vld [vmem:[%s3 + $0x350] sm:$0xff]
  %v1234 = vld [vmem:[%s3 + $0x358] sm:$0xff]
  %v1235 = vld [vmem:[%s3 + $0x360] sm:$0xff]
  %v1236 = vld [vmem:[%s3 + $0x368] sm:$0xff]
  %v1237 = vld [vmem:[%s3 + $0x370] sm:$0xff]
  %v1238 = vld [vmem:[%s3 + $0x378] sm:$0xff]
  %v1239 = vld [vmem:[%s3 + $0x380] sm:$0xff]
  %v1240 = vld [vmem:[%s3 + $0x388] sm:$0xff]
  %v1241 = vld [vmem:[%s3 + $0x390] sm:$0xff]
  %v1242 = vld [vmem:[%s3 + $0x398] sm:$0xff]
  %v1243 = vld [vmem:[%s3 + $0x3a0] sm:$0xff]
  %v1244 = vld [vmem:[%s3 + $0x3a8] sm:$0xff]
  %v1245 = vld [vmem:[%s3 + $0x3b0] sm:$0xff]
  %v1246 = vld [vmem:[%s3 + $0x3b8] sm:$0xff]
  %v1247 = vld [vmem:[%s3 + $0x3c0] sm:$0xff]
  %v1248 = vld [vmem:[%s3 + $0x3c8] sm:$0xff]
  %v1249 = vld [vmem:[%s3 + $0x3d0] sm:$0xff]
  %v1250 = vld [vmem:[%s3 + $0x3d8] sm:$0xff]
  %v1251 = vld [vmem:[%s3 + $0x3e0] sm:$0xff]
  %v1252 = vld [vmem:[%s3 + $0x3e8] sm:$0xff]
  %v1253 = vld [vmem:[%s3 + $0x3f0] sm:$0xff]
  %v1254 = vld [vmem:[%s3 + $0x3f8] sm:$0xff]
  %v1255 = vld [vmem:[%s3 + $0x400] sm:$0xff]
  %v1256 = vld [vmem:[%s3 + $0x408] sm:$0xff]
  %v1257 = vld [vmem:[%s3 + $0x410] sm:$0xff]
  %v1258 = vld [vmem:[%s3 + $0x418] sm:$0xff]
  %v1259 = vld [vmem:[%s3 + $0x420] sm:$0xff]
  %v1260 = vld [vmem:[%s3 + $0x428] sm:$0xff]
  %v1261 = vld [vmem:[%s3 + $0x430] sm:$0xff]
  %v1262 = vld [vmem:[%s3 + $0x438] sm:$0xff]
  %v1263 = vld [vmem:[%s3 + $0x440] sm:$0xff]
  %v1264 = vld [vmem:[%s3 + $0x448] sm:$0xff]
  %v1265 = vld [vmem:[%s3 + $0x450] sm:$0xff]
  %v1266 = vld [vmem:[%s3 + $0x458] sm:$0xff]
  %v1267 = vld [vmem:[%s3 + $0x460] sm:$0xff]
  %v1268 = vld [vmem:[%s3 + $0x468] sm:$0xff]
  %v1269 = vld [vmem:[%s3 + $0x470] sm:$0xff]
  %v1270 = vld [vmem:[%s3 + $0x478] sm:$0xff]
  %v1271 = vld [vmem:[%s3 + $0x480] sm:$0xff]
  %v1272 = vld [vmem:[%s3 + $0x488] sm:$0xff]
  %v1273 = vld [vmem:[%s3 + $0x490] sm:$0xff]
  %v1274 = vld [vmem:[%s3 + $0x498] sm:$0xff]
  %v1275 = vld [vmem:[%s3 + $0x4a0] sm:$0xff]
  %v1276 = vld [vmem:[%s3 + $0x4a8] sm:$0xff]
  %v1277 = vld [vmem:[%s3 + $0x4b0] sm:$0xff]
  %v1278 = vld [vmem:[%s3 + $0x4b8] sm:$0xff]
  %v1279 = vld [vmem:[%s3 + $0x4c0] sm:$0xff]
  %v1280 = vld [vmem:[%s3 + $0x4c8] sm:$0xff]
  %v1281 = vld [vmem:[%s3 + $0x4d0] sm:$0xff]
  %v1282 = vld [vmem:[%s3 + $0x4d8] sm:$0xff]
  %v1283 = vld [vmem:[%s3 + $0x4e0] sm:$0xff]
  %v1284 = vld [vmem:[%s3 + $0x4e8] sm:$0xff]
  %v1285 = vld [vmem:[%s3 + $0x4f0] sm:$0xff]
  %v1286 = vld [vmem:[%s3 + $0x4f8] sm:$0xff]
  %v1287 = vld [vmem:[%s3 + $0x500] sm:$0xff]
  %v1288 = vld [vmem:[%s3 + $0x508] sm:$0xff]
  %v1289 = vld [vmem:[%s3 + $0x510] sm:$0xff]
  %v1290 = vld [vmem:[%s3 + $0x518] sm:$0xff]
  %v1291 = vld [vmem:[%s3 + $0x520] sm:$0xff]
  %v1292 = vld [vmem:[%s3 + $0x528] sm:$0xff]
  %v1293 = vld [vmem:[%s3 + $0x530] sm:$0xff]
  %v1294 = vld [vmem:[%s3 + $0x538] sm:$0xff]
  %v1295 = vld [vmem:[%s3 + $0x540] sm:$0xff]
  %v1296 = vld [vmem:[%s3 + $0x548] sm:$0xff]
  %v1297 = vld [vmem:[%s3 + $0x550] sm:$0xff]
  %v1298 = vld [vmem:[%s3 + $0x558] sm:$0xff]
  %v1299 = vld [vmem:[%s3 + $0x560] sm:$0xff]
  %v1300 = vld [vmem:[%s3 + $0x568] sm:$0xff]
  %v1301 = vld [vmem:[%s3 + $0x570] sm:$0xff]
  %v1302 = vld [vmem:[%s3 + $0x578] sm:$0xff]
  %v1303 = vld [vmem:[%s3 + $0x580] sm:$0xff]
  %v1304 = vld [vmem:[%s3 + $0x588] sm:$0xff]
  %v1305 = vld [vmem:[%s3 + $0x590] sm:$0xff]
  %v1306 = vld [vmem:[%s3 + $0x598] sm:$0xff]
  %v1307 = vld [vmem:[%s3 + $0x5a0] sm:$0xff]
  %v1308 = vld [vmem:[%s3 + $0x5a8] sm:$0xff]
  %v1309 = vld [vmem:[%s3 + $0x5b0] sm:$0xff]
  %v1310 = vld [vmem:[%s3 + $0x5b8] sm:$0xff]
  %v1311 = vld [vmem:[%s3 + $0x5c0] sm:$0xff]
  %v1312 = vld [vmem:[%s3 + $0x5c8] sm:$0xff]
  %v1313 = vld [vmem:[%s3 + $0x5d0] sm:$0xff]
  %v1314 = vld [vmem:[%s3 + $0x5d8] sm:$0xff]
  %v1315 = vld [vmem:[%s3 + $0x5e0] sm:$0xff]
  %v1316 = vld [vmem:[%s3 + $0x5e8] sm:$0xff]
  %v1317 = vld [vmem:[%s3 + $0x5f0] sm:$0xff]
  %v1318 = vld [vmem:[%s3 + $0x5f8] sm:$0xff]
  %v1319 = vld [vmem:[%s3 + $0x600] sm:$0xff]
  %v1320 = vld [vmem:[%s3 + $0x608] sm:$0xff]
  %v1321 = vld [vmem:[%s3 + $0x610] sm:$0xff]
  %v1322 = vld [vmem:[%s3 + $0x618] sm:$0xff]
  %v1323 = vld [vmem:[%s3 + $0x620] sm:$0xff]
  %v1324 = vld [vmem:[%s3 + $0x628] sm:$0xff]
  %v1325 = vld [vmem:[%s3 + $0x630] sm:$0xff]
  %v1326 = vld [vmem:[%s3 + $0x638] sm:$0xff]
  %v1327 = vld [vmem:[%s3 + $0x640] sm:$0xff]
  %v1328 = vld [vmem:[%s3 + $0x648] sm:$0xff]
  %v1329 = vld [vmem:[%s3 + $0x650] sm:$0xff]
  %v1330 = vld [vmem:[%s3 + $0x658] sm:$0xff]
  %v1331 = vld [vmem:[%s3 + $0x660] sm:$0xff]
  %v1332 = vld [vmem:[%s3 + $0x668] sm:$0xff]
  %v1333 = vld [vmem:[%s3 + $0x670] sm:$0xff]
  %v1334 = vld [vmem:[%s3 + $0x678] sm:$0xff]
  %v1335 = vld [vmem:[%s3 + $0x680] sm:$0xff]
  %v1336 = vld [vmem:[%s3 + $0x688] sm:$0xff]
  %v1337 = vld [vmem:[%s3 + $0x690] sm:$0xff]
  %v1338 = vld [vmem:[%s3 + $0x698] sm:$0xff]
  %v1339 = vld [vmem:[%s3 + $0x6a0] sm:$0xff]
  %v1340 = vld [vmem:[%s3 + $0x6a8] sm:$0xff]
  %v1341 = vld [vmem:[%s3 + $0x6b0] sm:$0xff]
  %v1342 = vld [vmem:[%s3 + $0x6b8] sm:$0xff]
  %vm1343 = vcmask 261120
  %v1345 = vsel %vm1343, %v1129, 0
  %v1348 = vsel %vm1343, %v1132, 0
  %v1351 = vsel %vm1343, %v1135, 0
  %v1354 = vsel %vm1343, %v1138, 0
  %v1357 = vsel %vm1343, %v1141, 0
  %v1360 = vsel %vm1343, %v1144, 0
  %v1363 = vsel %vm1343, %v1147, 0
  %v1366 = vsel %vm1343, %v1150, 0
  %v1369 = vsel %vm1343, %v1153, 0
  %v1372 = vsel %vm1343, %v1156, 0
  %v1375 = vsel %vm1343, %v1159, 0
  %v1378 = vsel %vm1343, %v1162, 0
  %v1381 = vsel %vm1343, %v1165, 0
  %v1384 = vsel %vm1343, %v1168, 0
  %v1387 = vsel %vm1343, %v1171, 0
  %v1390 = vsel %vm1343, %v1174, 0
  %v1393 = vsel %vm1343, %v1177, 0
  %v1396 = vsel %vm1343, %v1180, 0
  %v1399 = vsel %vm1343, %v1183, 0
  %v1402 = vsel %vm1343, %v1186, 0
  %v1405 = vsel %vm1343, %v1189, 0
  %v1408 = vsel %vm1343, %v1192, 0
  %v1411 = vsel %vm1343, %v1195, 0
  %v1414 = vsel %vm1343, %v1198, 0
  %v1417 = vsel %vm1343, %v1201, 0
  %v1420 = vsel %vm1343, %v1204, 0
  %v1423 = vsel %vm1343, %v1207, 0
  %v1426 = vsel %vm1343, %v1210, 0
  %v1429 = vsel %vm1343, %v1213, 0
  %v1432 = vsel %vm1343, %v1216, 0
  %v1435 = vsel %vm1343, %v1219, 0
  %v1438 = vsel %vm1343, %v1222, 0
  %v1441 = vsel %vm1343, %v1225, 0
  %v1444 = vsel %vm1343, %v1228, 0
  %v1447 = vsel %vm1343, %v1231, 0
  %v1450 = vsel %vm1343, %v1234, 0
  %v1453 = vsel %vm1343, %v1237, 0
  %v1456 = vsel %vm1343, %v1240, 0
  %v1459 = vsel %vm1343, %v1243, 0
  %v1462 = vsel %vm1343, %v1246, 0
  %v1465 = vsel %vm1343, %v1249, 0
  %v1468 = vsel %vm1343, %v1252, 0
  %v1471 = vsel %vm1343, %v1255, 0
  %v1474 = vsel %vm1343, %v1258, 0
  %v1477 = vsel %vm1343, %v1261, 0
  %v1480 = vsel %vm1343, %v1264, 0
  %v1483 = vsel %vm1343, %v1267, 0
  %v1486 = vsel %vm1343, %v1270, 0
  %v1489 = vsel %vm1343, %v1273, 0
  %v1492 = vsel %vm1343, %v1276, 0
  %v1495 = vsel %vm1343, %v1279, 0
  %v1498 = vsel %vm1343, %v1282, 0
  %v1501 = vsel %vm1343, %v1285, 0
  %v1504 = vsel %vm1343, %v1288, 0
  %v1507 = vsel %vm1343, %v1291, 0
  %v1510 = vsel %vm1343, %v1294, 0
  %v1513 = vsel %vm1343, %v1297, 0
  %v1516 = vsel %vm1343, %v1300, 0
  %v1519 = vsel %vm1343, %v1303, 0
  %v1522 = vsel %vm1343, %v1306, 0
  %v1525 = vsel %vm1343, %v1309, 0
  %v1528 = vsel %vm1343, %v1312, 0
  %v1531 = vsel %vm1343, %v1315, 0
  %v1534 = vsel %vm1343, %v1318, 0
  %v1537 = vsel %vm1343, %v1321, 0
  %v1540 = vsel %vm1343, %v1324, 0
  %v1543 = vsel %vm1343, %v1327, 0
  %v1546 = vsel %vm1343, %v1330, 0
  %v1549 = vsel %vm1343, %v1333, 0
  %v1552 = vsel %vm1343, %v1336, 0
  %v1555 = vsel %vm1343, %v1339, 0
  %v1558 = vsel %vm1343, %v1342, 0
  %1560 = vmatprep.subr.mxu0 0.0
  %1561 = vmatpush1.msra.mxu0 %v1035
  %1562 = vmatprep.subr.mxu0 0.0
  %1563 = vmatpush1.msra.mxu0 %v1036
  %1564 = vmatprep.subr.mxu0 0.0
  %1565 = vmatpush1.msra.mxu0 %v1037
  %1566 = vmatprep.subr.mxu0 0.0
  %1567 = vmatpush1.msra.mxu0 %v1038
  %1568 = vmatprep.subr.mxu0 0.0
  %1569 = vmatpush1.msra.mxu0 %v1099
  %1570 = vmatprep.subr.mxu0 0.0
  %1571 = vmatpush1.msra.mxu0 %v1100
  %1572 = vmatprep.subr.mxu0 0.0
  %1573 = vmatpush1.msra.mxu0 %v1101
  %1574 = vmatprep.subr.mxu0 0.0
  %1575 = vmatpush1.msra.mxu0 %v1102
  %1576 = vmatprep.subr.mxu0 0.0
  %1577 = vmatpush1.msra.mxu0 %v1103
  %1578 = vmatprep.subr.mxu0 0.0
  %1579 = vmatpush1.msra.mxu0 %v1104
  %1580 = vmatprep.subr.mxu0 0.0
  %1581 = vmatpush1.msra.mxu0 %v1105
  %1582 = vmatprep.subr.mxu0 0.0
  %1583 = vmatpush1.msra.mxu0 %v1106
  %1584 = vmatprep.subr.mxu0 0.0
  %1585 = vmatpush1.msra.mxu0 %v1107
  %1586 = vmatprep.subr.mxu0 0.0
  %1587 = vmatpush1.msra.mxu0 %v1108
  %1588 = vmatprep.subr.mxu0 0.0
  %1589 = vmatpush1.msra.mxu0 %v1109
  %1590 = vmatprep.subr.mxu0 0.0
  %1591 = vmatpush1.msra.mxu0 %v1110
  %1592 = vmatprep.subr.mxu0 0.0
  %1593 = vmatpush1.msra.mxu0 %v1111
  %1594 = vmatprep.subr.mxu0 0.0
  %1595 = vmatpush1.msra.mxu0 %v1112
  %1596 = vmatprep.subr.mxu0 0.0
  %1597 = vmatpush1.msra.mxu0 %v1113
  %1598 = vmatprep.subr.mxu0 0.0
  %1599 = vmatpush1.msra.mxu0 %v1114
  %1600 = vmatprep.subr.mxu0 0.0
  %1601 = vmatpush1.msra.mxu0 %v1115
  %1602 = vmatprep.subr.mxu0 0.0
  %1603 = vmatpush1.msra.mxu0 %v1116
  %1604 = vmatprep.subr.mxu0 0.0
  %1605 = vmatpush1.msra.mxu0 %v1117
  %1606 = vmatprep.subr.mxu0 0.0
  %1607 = vmatpush1.msra.mxu0 %v1118
  %1608 = vmatprep.subr.mxu0 0.0
  %1609 = vmatpush1.msra.mxu0 %v1119
  %1610 = vmatprep.subr.mxu0 0.0
  %1611 = vmatpush1.msra.mxu0 %v1120
  %1612 = vmatprep.subr.mxu0 0.0
  %1613 = vmatpush1.msra.mxu0 %v1121
  %1614 = vmatprep.subr.mxu0 0.0
  %1615 = vmatpush1.msra.mxu0 %v1122
  %1616 = vmatprep.subr.mxu0 0.0
  %1617 = vmatpush1.msra.mxu0 %v1123
  %1618 = vmatprep.subr.mxu0 0.0
  %1619 = vmatpush1.msra.mxu0 %v1124
  %1620 = vmatprep.subr.mxu0 0.0
  %1621 = vmatpush1.msra.mxu0 %v1125
  %1622 = vmatprep.subr.mxu0 0.0
  %1623 = vmatpush1.msra.mxu0 %v1126
  %1624 = vmatprep.mubr.f32.mxu0 %v1128
  %1625 = vmatmul.mubr.f32.gmra.mrb[0].mxu0 %v1127
  %v1626 = vpop.f32.mrb[0].mxu0
  %v1627 = vadd.f32 0.0, %v1626
  %v1628 = vpop.f32.mrb[0].mxu0
  %1629 = vmatprep.mubr.f32.mxu0 %v1131
  %1630 = vmatmul.mubr.f32.gmra.mrb[0].mxu0 %v1130
  %v1631 = vpop.f32.mrb[0].mxu0
  %v1632 = vadd.f32 0.0, %v1631
  %v1633 = vpop.f32.mrb[0].mxu0
  %1634 = vmatprep.mubr.f32.mxu0 %v1134
  %1635 = vmatmul.mubr.f32.gmra.mrb[0].mxu0 %v1133
  %v1636 = vpop.f32.mrb[0].mxu0
  %v1637 = vadd.f32 0.0, %v1636
  %v1638 = vpop.f32.mrb[0].mxu0
  %1639 = vmatprep.mubr.f32.mxu0 %v1137
  %1640 = vmatmul.mubr.f32.gmra.mrb[0].mxu0 %v1136
  %v1641 = vpop.f32.mrb[0].mxu0
  %v1642 = vadd.f32 0.0, %v1641
  %v1643 = vpop.f32.mrb[0].mxu0
  %1644 = vmatprep.mubr.f32.mxu0 %v1140
  %1645 = vmatmul.mubr.f32.gmra.mrb[0].mxu0 %v1139
  %v1646 = vpop.f32.mrb[0].mxu0
  %v1647 = vadd.f32 0.0, %v1646
  %v1648 = vpop.f32.mrb[0].mxu0
  %1649 = vmatprep.mubr.f32.mxu0 %v1143
  %1650 = vmatmul.mubr.f32.gmra.mrb[0].mxu0 %v1142
  %v1651 = vpop.f32.mrb[0].mxu0
  %v1652 = vadd.f32 0.0, %v1651
  %v1653 = vpop.f32.mrb[0].mxu0
  %1654 = vmatprep.mubr.f32.mxu0 %v1146
  %1655 = vmatmul.mubr.f32.gmra.mrb[0].mxu0 %v1145
  %v1656 = vpop.f32.mrb[0].mxu0
  %v1657 = vadd.f32 0.0, %v1656
  %v1658 = vpop.f32.mrb[0].mxu0
  %1659 = vmatprep.mubr.f32.mxu0 %v1149
  %1660 = vmatmul.mubr.f32.gmra.mrb[0].mxu0 %v1148
  %v1661 = vpop.f32.mrb[0].mxu0
  %v1662 = vadd.f32 0.0, %v1661
  %v1663 = vpop.f32.mrb[0].mxu0
  %1664 = vmatprep.mubr.f32.mxu0 %v1152
  %1665 = vmatmul.mubr.f32.gmra.mrb[0].mxu0 %v1151
  %v1666 = vpop.f32.mrb[0].mxu0
  %v1667 = vadd.f32 0.0, %v1666
  %v1668 = vpop.f32.mrb[0].mxu0
  %1669 = vmatprep.mubr.f32.mxu0 %v1155
  %1670 = vmatmul.mubr.f32.gmra.mrb[0].mxu0 %v1154
  %v1671 = vpop.f32.mrb[0].mxu0
  %v1672 = vadd.f32 0.0, %v1671
  %v1673 = vpop.f32.mrb[0].mxu0
  %1674 = vmatprep.mubr.f32.mxu0 %v1158
  %1675 = vmatmul.mubr.f32.gmra.mrb[0].mxu0 %v1157
  %v1676 = vpop.f32.mrb[0].mxu0
  %v1677 = vadd.f32 0.0, %v1676
  %v1678 = vpop.f32.mrb[0].mxu0
  %1679 = vmatprep.mubr.f32.mxu0 %v1161
  %1680 = vmatmul.mubr.f32.gmra.mrb[0].mxu0 %v1160
  %v1681 = vpop.f32.mrb[0].mxu0
  %v1682 = vadd.f32 0.0, %v1681
  %v1683 = vpop.f32.mrb[0].mxu0
  %1684 = vmatprep.mubr.f32.mxu0 %v1164
  %1685 = vmatmul.mubr.f32.gmra.mrb[0].mxu0 %v1163
  %v1686 = vpop.f32.mrb[0].mxu0
  %v1687 = vadd.f32 0.0, %v1686
  %v1688 = vpop.f32.mrb[0].mxu0
  %1689 = vmatprep.mubr.f32.mxu0 %v1167
  %1690 = vmatmul.mubr.f32.gmra.mrb[0].mxu0 %v1166
  %v1691 = vpop.f32.mrb[0].mxu0
  %v1692 = vadd.f32 0.0, %v1691
  %v1693 = vpop.f32.mrb[0].mxu0
  %1694 = vmatprep.mubr.f32.mxu0 %v1170
  %1695 = vmatmul.mubr.f32.gmra.mrb[0].mxu0 %v1169
  %v1696 = vpop.f32.mrb[0].mxu0
  %v1697 = vadd.f32 0.0, %v1696
  %v1698 = vpop.f32.mrb[0].mxu0
  %1699 = vmatprep.mubr.f32.mxu0 %v1173
  %1700 = vmatmul.mubr.f32.gmra.mrb[0].mxu0 %v1172
  %v1701 = vpop.f32.mrb[0].mxu0
  %v1702 = vadd.f32 0.0, %v1701
  %v1703 = vpop.f32.mrb[0].mxu0
  %1704 = vmatprep.mubr.f32.mxu0 %v1176
  %1705 = vmatmul.mubr.f32.gmra.mrb[0].mxu0 %v1175
  %v1706 = vpop.f32.mrb[0].mxu0
  %v1707 = vadd.f32 0.0, %v1706
  %v1708 = vpop.f32.mrb[0].mxu0
  %1709 = vmatprep.mubr.f32.mxu0 %v1179
  %1710 = vmatmul.mubr.f32.gmra.mrb[0].mxu0 %v1178
  %v1711 = vpop.f32.mrb[0].mxu0
  %v1712 = vadd.f32 0.0, %v1711
  %v1713 = vpop.f32.mrb[0].mxu0
  %1714 = vmatprep.mubr.f32.mxu0 %v1182
  %1715 = vmatmul.mubr.f32.gmra.mrb[0].mxu0 %v1181
  %v1716 = vpop.f32.mrb[0].mxu0
  %v1717 = vadd.f32 0.0, %v1716
  %v1718 = vpop.f32.mrb[0].mxu0
  %1719 = vmatprep.mubr.f32.mxu0 %v1185
  %1720 = vmatmul.mubr.f32.gmra.mrb[0].mxu0 %v1184
  %v1721 = vpop.f32.mrb[0].mxu0
  %v1722 = vadd.f32 0.0, %v1721
  %v1723 = vpop.f32.mrb[0].mxu0
  %1724 = vmatprep.mubr.f32.mxu0 %v1188
  %1725 = vmatmul.mubr.f32.gmra.mrb[0].mxu0 %v1187
  %v1726 = vpop.f32.mrb[0].mxu0
  %v1727 = vadd.f32 0.0, %v1726
  %v1728 = vpop.f32.mrb[0].mxu0
  %1729 = vmatprep.mubr.f32.mxu0 %v1191
  %1730 = vmatmul.mubr.f32.gmra.mrb[0].mxu0 %v1190
  %v1731 = vpop.f32.mrb[0].mxu0
  %v1732 = vadd.f32 0.0, %v1731
  %v1733 = vpop.f32.mrb[0].mxu0
  %1734 = vmatprep.mubr.f32.mxu0 %v1194
  %1735 = vmatmul.mubr.f32.gmra.mrb[0].mxu0 %v1193
  %v1736 = vpop.f32.mrb[0].mxu0
  %v1737 = vadd.f32 0.0, %v1736
  %v1738 = vpop.f32.mrb[0].mxu0
  %1739 = vmatprep.mubr.f32.mxu0 %v1197
  %1740 = vmatmul.mubr.f32.gmra.mrb[0].mxu0 %v1196
  %v1741 = vpop.f32.mrb[0].mxu0
  %v1742 = vadd.f32 0.0, %v1741
  %v1743 = vpop.f32.mrb[0].mxu0
  %1744 = vmatprep.mubr.f32.mxu0 %v1200
  %1745 = vmatmul.mubr.f32.gmra.mrb[0].mxu0 %v1199
  %v1746 = vpop.f32.mrb[0].mxu0
  %v1747 = vadd.f32 0.0, %v1746
  %v1748 = vpop.f32.mrb[0].mxu0
  %1749 = vmatprep.mubr.f32.mxu0 %v1203
  %1750 = vmatmul.mubr.f32.gmra.mrb[0].mxu0 %v1202
  %v1751 = vpop.f32.mrb[0].mxu0
  %v1752 = vadd.f32 0.0, %v1751
  %v1753 = vpop.f32.mrb[0].mxu0
  %1754 = vmatprep.mubr.f32.mxu0 %v1206
  %1755 = vmatmul.mubr.f32.gmra.mrb[0].mxu0 %v1205
  %v1756 = vpop.f32.mrb[0].mxu0
  %v1757 = vadd.f32 0.0, %v1756
  %v1758 = vpop.f32.mrb[0].mxu0
  %1759 = vmatprep.mubr.f32.mxu0 %v1209
  %1760 = vmatmul.mubr.f32.gmra.mrb[0].mxu0 %v1208
  %v1761 = vpop.f32.mrb[0].mxu0
  %v1762 = vadd.f32 0.0, %v1761
  %v1763 = vpop.f32.mrb[0].mxu0
  %1764 = vmatprep.mubr.f32.mxu0 %v1212
  %1765 = vmatmul.mubr.f32.gmra.mrb[0].mxu0 %v1211
  %v1766 = vpop.f32.mrb[0].mxu0
  %v1767 = vadd.f32 0.0, %v1766
  %v1768 = vpop.f32.mrb[0].mxu0
  %1769 = vmatprep.mubr.f32.mxu0 %v1215
  %1770 = vmatmul.mubr.f32.gmra.mrb[0].mxu0 %v1214
  %v1771 = vpop.f32.mrb[0].mxu0
  %v1772 = vadd.f32 0.0, %v1771
  %v1773 = vpop.f32.mrb[0].mxu0
  %1774 = vmatprep.mubr.f32.mxu0 %v1218
  %1775 = vmatmul.mubr.f32.gmra.mrb[0].mxu0 %v1217
  %v1776 = vpop.f32.mrb[0].mxu0
  %v1777 = vadd.f32 0.0, %v1776
  %v1778 = vpop.f32.mrb[0].mxu0
  %1779 = vmatprep.mubr.f32.mxu0 %v1221
  %1780 = vmatmul.mubr.f32.gmra.mrb[0].mxu0 %v1220
  %v1781 = vpop.f32.mrb[0].mxu0
  %v1782 = vadd.f32 0.0, %v1781
  %v1783 = vpop.f32.mrb[0].mxu0
  %1784 = vmatprep.mubr.f32.mxu0 %v1224
  %1785 = vmatmul.mubr.f32.gmra.mrb[0].mxu0 %v1223
  %v1786 = vpop.f32.mrb[0].mxu0
  %v1787 = vadd.f32 0.0, %v1786
  %v1788 = vpop.f32.mrb[0].mxu0
  %1789 = vmatprep.mubr.f32.mxu0 %v1227
  %1790 = vmatmul.mubr.f32.gmra.mrb[0].mxu0 %v1226
  %v1791 = vpop.f32.mrb[0].mxu0
  %v1792 = vadd.f32 0.0, %v1791
  %v1793 = vpop.f32.mrb[0].mxu0
  %1794 = vmatprep.mubr.f32.mxu0 %v1230
  %1795 = vmatmul.mubr.f32.gmra.mrb[0].mxu0 %v1229
  %v1796 = vpop.f32.mrb[0].mxu0
  %v1797 = vadd.f32 0.0, %v1796
  %v1798 = vpop.f32.mrb[0].mxu0
  %1799 = vmatprep.mubr.f32.mxu0 %v1233
  %1800 = vmatmul.mubr.f32.gmra.mrb[0].mxu0 %v1232
  %v1801 = vpop.f32.mrb[0].mxu0
  %v1802 = vadd.f32 0.0, %v1801
  %v1803 = vpop.f32.mrb[0].mxu0
  %1804 = vmatprep.mubr.f32.mxu0 %v1236
  %1805 = vmatmul.mubr.f32.gmra.mrb[0].mxu0 %v1235
  %v1806 = vpop.f32.mrb[0].mxu0
  %v1807 = vadd.f32 0.0, %v1806
  %v1808 = vpop.f32.mrb[0].mxu0
  %1809 = vmatprep.mubr.f32.mxu0 %v1239
  %1810 = vmatmul.mubr.f32.gmra.mrb[0].mxu0 %v1238
  %v1811 = vpop.f32.mrb[0].mxu0
  %v1812 = vadd.f32 0.0, %v1811
  %v1813 = vpop.f32.mrb[0].mxu0
  %1814 = vmatprep.mubr.f32.mxu0 %v1242
  %1815 = vmatmul.mubr.f32.gmra.mrb[0].mxu0 %v1241
  %v1816 = vpop.f32.mrb[0].mxu0
  %v1817 = vadd.f32 0.0, %v1816
  %v1818 = vpop.f32.mrb[0].mxu0
  %1819 = vmatprep.mubr.f32.mxu0 %v1245
  %1820 = vmatmul.mubr.f32.gmra.mrb[0].mxu0 %v1244
  %v1821 = vpop.f32.mrb[0].mxu0
  %v1822 = vadd.f32 0.0, %v1821
  %v1823 = vpop.f32.mrb[0].mxu0
  %1824 = vmatprep.mubr.f32.mxu0 %v1248
  %1825 = vmatmul.mubr.f32.gmra.mrb[0].mxu0 %v1247
  %v1826 = vpop.f32.mrb[0].mxu0
  %v1827 = vadd.f32 0.0, %v1826
  %v1828 = vpop.f32.mrb[0].mxu0
  %1829 = vmatprep.mubr.f32.mxu0 %v1251
  %1830 = vmatmul.mubr.f32.gmra.mrb[0].mxu0 %v1250
  %v1831 = vpop.f32.mrb[0].mxu0
  %v1832 = vadd.f32 0.0, %v1831
  %v1833 = vpop.f32.mrb[0].mxu0
  %1834 = vmatprep.mubr.f32.mxu0 %v1254
  %1835 = vmatmul.mubr.f32.gmra.mrb[0].mxu0 %v1253
  %v1836 = vpop.f32.mrb[0].mxu0
  %v1837 = vadd.f32 0.0, %v1836
  %v1838 = vpop.f32.mrb[0].mxu0
  %1839 = vmatprep.mubr.f32.mxu0 %v1257
  %1840 = vmatmul.mubr.f32.gmra.mrb[0].mxu0 %v1256
  %v1841 = vpop.f32.mrb[0].mxu0
  %v1842 = vadd.f32 0.0, %v1841
  %v1843 = vpop.f32.mrb[0].mxu0
  %1844 = vmatprep.mubr.f32.mxu0 %v1260
  %1845 = vmatmul.mubr.f32.gmra.mrb[0].mxu0 %v1259
  %v1846 = vpop.f32.mrb[0].mxu0
  %v1847 = vadd.f32 0.0, %v1846
  %v1848 = vpop.f32.mrb[0].mxu0
  %1849 = vmatprep.mubr.f32.mxu0 %v1263
  %1850 = vmatmul.mubr.f32.gmra.mrb[0].mxu0 %v1262
  %v1851 = vpop.f32.mrb[0].mxu0
  %v1852 = vadd.f32 0.0, %v1851
  %v1853 = vpop.f32.mrb[0].mxu0
  %1854 = vmatprep.mubr.f32.mxu0 %v1266
  %1855 = vmatmul.mubr.f32.gmra.mrb[0].mxu0 %v1265
  %v1856 = vpop.f32.mrb[0].mxu0
  %v1857 = vadd.f32 0.0, %v1856
  %v1858 = vpop.f32.mrb[0].mxu0
  %1859 = vmatprep.mubr.f32.mxu0 %v1269
  %1860 = vmatmul.mubr.f32.gmra.mrb[0].mxu0 %v1268
  %v1861 = vpop.f32.mrb[0].mxu0
  %v1862 = vadd.f32 0.0, %v1861
  %v1863 = vpop.f32.mrb[0].mxu0
  %1864 = vmatprep.mubr.f32.mxu0 %v1272
  %1865 = vmatmul.mubr.f32.gmra.mrb[0].mxu0 %v1271
  %v1866 = vpop.f32.mrb[0].mxu0
  %v1867 = vadd.f32 0.0, %v1866
  %v1868 = vpop.f32.mrb[0].mxu0
  %1869 = vmatprep.mubr.f32.mxu0 %v1275
  %1870 = vmatmul.mubr.f32.gmra.mrb[0].mxu0 %v1274
  %v1871 = vpop.f32.mrb[0].mxu0
  %v1872 = vadd.f32 0.0, %v1871
  %v1873 = vpop.f32.mrb[0].mxu0
  %1874 = vmatprep.mubr.f32.mxu0 %v1278
  %1875 = vmatmul.mubr.f32.gmra.mrb[0].mxu0 %v1277
  %v1876 = vpop.f32.mrb[0].mxu0
  %v1877 = vadd.f32 0.0, %v1876
  %v1878 = vpop.f32.mrb[0].mxu0
  %1879 = vmatprep.mubr.f32.mxu0 %v1281
  %1880 = vmatmul.mubr.f32.gmra.mrb[0].mxu0 %v1280
  %v1881 = vpop.f32.mrb[0].mxu0
  %v1882 = vadd.f32 0.0, %v1881
  %v1883 = vpop.f32.mrb[0].mxu0
  %1884 = vmatprep.mubr.f32.mxu0 %v1284
  %1885 = vmatmul.mubr.f32.gmra.mrb[0].mxu0 %v1283
  %v1886 = vpop.f32.mrb[0].mxu0
  %v1887 = vadd.f32 0.0, %v1886
  %v1888 = vpop.f32.mrb[0].mxu0
  %1889 = vmatprep.mubr.f32.mxu0 %v1287
  %1890 = vmatmul.mubr.f32.gmra.mrb[0].mxu0 %v1286
  %v1891 = vpop.f32.mrb[0].mxu0
  %v1892 = vadd.f32 0.0, %v1891
  %v1893 = vpop.f32.mrb[0].mxu0
  %1894 = vmatprep.mubr.f32.mxu0 %v1290
  %1895 = vmatmul.mubr.f32.gmra.mrb[0].mxu0 %v1289
  %v1896 = vpop.f32.mrb[0].mxu0
  %v1897 = vadd.f32 0.0, %v1896
  %v1898 = vpop.f32.mrb[0].mxu0
  %1899 = vmatprep.mubr.f32.mxu0 %v1293
  %1900 = vmatmul.mubr.f32.gmra.mrb[0].mxu0 %v1292
  %v1901 = vpop.f32.mrb[0].mxu0
  %v1902 = vadd.f32 0.0, %v1901
  %v1903 = vpop.f32.mrb[0].mxu0
  %1904 = vmatprep.mubr.f32.mxu0 %v1296
  %1905 = vmatmul.mubr.f32.gmra.mrb[0].mxu0 %v1295
  %v1906 = vpop.f32.mrb[0].mxu0
  %v1907 = vadd.f32 0.0, %v1906
  %v1908 = vpop.f32.mrb[0].mxu0
  %1909 = vmatprep.mubr.f32.mxu0 %v1299
  %1910 = vmatmul.mubr.f32.gmra.mrb[0].mxu0 %v1298
  %v1911 = vpop.f32.mrb[0].mxu0
  %v1912 = vadd.f32 0.0, %v1911
  %v1913 = vpop.f32.mrb[0].mxu0
  %1914 = vmatprep.mubr.f32.mxu0 %v1302
  %1915 = vmatmul.mubr.f32.gmra.mrb[0].mxu0 %v1301
  %v1916 = vpop.f32.mrb[0].mxu0
  %v1917 = vadd.f32 0.0, %v1916
  %v1918 = vpop.f32.mrb[0].mxu0
  %1919 = vmatprep.mubr.f32.mxu0 %v1305
  %1920 = vmatmul.mubr.f32.gmra.mrb[0].mxu0 %v1304
  %v1921 = vpop.f32.mrb[0].mxu0
  %v1922 = vadd.f32 0.0, %v1921
  %v1923 = vpop.f32.mrb[0].mxu0
  %1924 = vmatprep.mubr.f32.mxu0 %v1308
  %1925 = vmatmul.mubr.f32.gmra.mrb[0].mxu0 %v1307
  %v1926 = vpop.f32.mrb[0].mxu0
  %v1927 = vadd.f32 0.0, %v1926
  %v1928 = vpop.f32.mrb[0].mxu0
  %1929 = vmatprep.mubr.f32.mxu0 %v1311
  %1930 = vmatmul.mubr.f32.gmra.mrb[0].mxu0 %v1310
  %v1931 = vpop.f32.mrb[0].mxu0
  %v1932 = vadd.f32 0.0, %v1931
  %v1933 = vpop.f32.mrb[0].mxu0
  %1934 = vmatprep.mubr.f32.mxu0 %v1314
  %1935 = vmatmul.mubr.f32.gmra.mrb[0].mxu0 %v1313
  %v1936 = vpop.f32.mrb[0].mxu0
  %v1937 = vadd.f32 0.0, %v1936
  %v1938 = vpop.f32.mrb[0].mxu0
  %1939 = vmatprep.mubr.f32.mxu0 %v1317
  %1940 = vmatmul.mubr.f32.gmra.mrb[0].mxu0 %v1316
  %v1941 = vpop.f32.mrb[0].mxu0
  %v1942 = vadd.f32 0.0, %v1941
  %v1943 = vpop.f32.mrb[0].mxu0
  %1944 = vmatprep.mubr.f32.mxu0 %v1320
  %1945 = vmatmul.mubr.f32.gmra.mrb[0].mxu0 %v1319
  %v1946 = vpop.f32.mrb[0].mxu0
  %v1947 = vadd.f32 0.0, %v1946
  %v1948 = vpop.f32.mrb[0].mxu0
  %1949 = vmatprep.mubr.f32.mxu0 %v1323
  %1950 = vmatmul.mubr.f32.gmra.mrb[0].mxu0 %v1322
  %v1951 = vpop.f32.mrb[0].mxu0
  %v1952 = vadd.f32 0.0, %v1951
  %v1953 = vpop.f32.mrb[0].mxu0
  %1954 = vmatprep.mubr.f32.mxu0 %v1326
  %1955 = vmatmul.mubr.f32.gmra.mrb[0].mxu0 %v1325
  %v1956 = vpop.f32.mrb[0].mxu0
  %v1957 = vadd.f32 0.0, %v1956
  %v1958 = vpop.f32.mrb[0].mxu0
  %1959 = vmatprep.mubr.f32.mxu0 %v1329
  %1960 = vmatmul.mubr.f32.gmra.mrb[0].mxu0 %v1328
  %v1961 = vpop.f32.mrb[0].mxu0
  %v1962 = vadd.f32 0.0, %v1961
  %v1963 = vpop.f32.mrb[0].mxu0
  %1964 = vmatprep.mubr.f32.mxu0 %v1332
  %1965 = vmatmul.mubr.f32.gmra.mrb[0].mxu0 %v1331
  %v1966 = vpop.f32.mrb[0].mxu0
  %v1967 = vadd.f32 0.0, %v1966
  %v1968 = vpop.f32.mrb[0].mxu0
  %1969 = vmatprep.mubr.f32.mxu0 %v1335
  %1970 = vmatmul.mubr.f32.gmra.mrb[0].mxu0 %v1334
  %v1971 = vpop.f32.mrb[0].mxu0
  %v1972 = vadd.f32 0.0, %v1971
  %v1973 = vpop.f32.mrb[0].mxu0
  %1974 = vmatprep.mubr.f32.mxu0 %v1338
  %1975 = vmatmul.mubr.f32.gmra.mrb[0].mxu0 %v1337
  %v1976 = vpop.f32.mrb[0].mxu0
  %v1977 = vadd.f32 0.0, %v1976
  %v1978 = vpop.f32.mrb[0].mxu0
  %1979 = vmatprep.mubr.f32.mxu0 %v1341
  %1980 = vmatmul.mubr.f32.gmra.mrb[0].mxu0 %v1340
  %v1981 = vpop.f32.mrb[0].mxu0
  %v1982 = vadd.f32 0.0, %v1981
  %v1983 = vpop.f32.mrb[0].mxu0
  %1984 = vdwg.mxu0
  %1985 = vmatprep.subr.mxu0 0.0
  %1986 = vmatpush1.msra.mxu0 %v1095
  %1987 = vmatprep.subr.mxu0 0.0
  %1988 = vmatpush1.msra.mxu0 %v1096
  %1989 = vmatprep.subr.mxu0 0.0
  %1990 = vmatpush1.msra.mxu0 %v1097
  %1991 = vmatprep.subr.mxu0 0.0
  %1992 = vmatpush1.msra.mxu0 %v1098
  %1993 = vmatprep.subr.mxu0 0.0
  %1994 = vmatpush1.msra.mxu0 0.0
  %1995 = vmatprep.subr.mxu0 0.0
  %1996 = vmatpush1.msra.mxu0 0.0
  %1997 = vmatprep.subr.mxu0 0.0
  %1998 = vmatpush1.msra.mxu0 0.0
  %1999 = vmatprep.subr.mxu0 0.0
  %2000 = vmatpush1.msra.mxu0 0.0
  %2001 = vmatprep.subr.mxu0 0.0
  %2002 = vmatpush1.msra.mxu0 0.0
  %2003 = vmatprep.subr.mxu0 0.0
  %2004 = vmatpush1.msra.mxu0 0.0
  %2005 = vmatprep.subr.mxu0 0.0
  %2006 = vmatpush1.msra.mxu0 0.0
  %2007 = vmatprep.subr.mxu0 0.0
  %2008 = vmatpush1.msra.mxu0 0.0
  %2009 = vmatprep.subr.mxu0 0.0
  %2010 = vmatpush1.msra.mxu0 0.0
  %2011 = vmatprep.subr.mxu0 0.0
  %2012 = vmatpush1.msra.mxu0 0.0
  %2013 = vmatprep.subr.mxu0 0.0
  %2014 = vmatpush1.msra.mxu0 0.0
  %2015 = vmatprep.subr.mxu0 0.0
  %2016 = vmatpush1.msra.mxu0 0.0
  %2017 = vmatprep.subr.mxu0 0.0
  %2018 = vmatpush1.msra.mxu0 0.0
  %2019 = vmatprep.subr.mxu0 0.0
  %2020 = vmatpush1.msra.mxu0 0.0
  %2021 = vmatprep.subr.mxu0 0.0
  %2022 = vmatpush1.msra.mxu0 0.0
  %2023 = vmatprep.subr.mxu0 0.0
  %2024 = vmatpush1.msra.mxu0 0.0
  %2025 = vmatprep.subr.mxu0 0.0
  %2026 = vmatpush1.msra.mxu0 0.0
  %2027 = vmatprep.subr.mxu0 0.0
  %2028 = vmatpush1.msra.mxu0 0.0
  %2029 = vmatprep.subr.mxu0 0.0
  %2030 = vmatpush1.msra.mxu0 0.0
  %2031 = vmatprep.subr.mxu0 0.0
  %2032 = vmatpush1.msra.mxu0 0.0
  %2033 = vmatprep.subr.mxu0 0.0
  %2034 = vmatpush1.msra.mxu0 0.0
  %2035 = vmatprep.subr.mxu0 0.0
  %2036 = vmatpush1.msra.mxu0 0.0
  %2037 = vmatprep.subr.mxu0 0.0
  %2038 = vmatpush1.msra.mxu0 0.0
  %2039 = vmatprep.subr.mxu0 0.0
  %2040 = vmatpush1.msra.mxu0 0.0
  %2041 = vmatprep.subr.mxu0 0.0
  %2042 = vmatpush1.msra.mxu0 0.0
  %2043 = vmatprep.subr.mxu0 0.0
  %2044 = vmatpush1.msra.mxu0 0.0
  %2045 = vmatprep.subr.mxu0 0.0
  %2046 = vmatpush1.msra.mxu0 0.0
  %2047 = vmatprep.subr.mxu0 0.0
  %2048 = vmatpush1.msra.mxu0 0.0
  %2049 = vmatprep.mubr.f32.mxu0 0.0
  %2050 = vmatmul.mubr.f32.gmra.mrb[0].mxu0 %v1345
  %v2051 = vpop.f32.mrb[0].mxu0
  %v2052 = vadd.f32 %v1627, %v2051
  %v2053 = vpop.f32.mrb[0].mxu0
  %2054 = vmatprep.mubr.f32.mxu0 0.0
  %2055 = vmatmul.mubr.f32.gmra.mrb[0].mxu0 %v1348
  %v2056 = vpop.f32.mrb[0].mxu0
  %v2057 = vadd.f32 %v1632, %v2056
  %v2058 = vpop.f32.mrb[0].mxu0
  %2059 = vmatprep.mubr.f32.mxu0 0.0
  %2060 = vmatmul.mubr.f32.gmra.mrb[0].mxu0 %v1351
  %v2061 = vpop.f32.mrb[0].mxu0
  %v2062 = vadd.f32 %v1637, %v2061
  %v2063 = vpop.f32.mrb[0].mxu0
  %2064 = vmatprep.mubr.f32.mxu0 0.0
  %2065 = vmatmul.mubr.f32.gmra.mrb[0].mxu0 %v1354
  %v2066 = vpop.f32.mrb[0].mxu0
  %v2067 = vadd.f32 %v1642, %v2066
  %v2068 = vpop.f32.mrb[0].mxu0
  %2069 = vmatprep.mubr.f32.mxu0 0.0
  %2070 = vmatmul.mubr.f32.gmra.mrb[0].mxu0 %v1357
  %v2071 = vpop.f32.mrb[0].mxu0
  %v2072 = vadd.f32 %v1647, %v2071
  %v2073 = vpop.f32.mrb[0].mxu0
  %2074 = vmatprep.mubr.f32.mxu0 0.0
  %2075 = vmatmul.mubr.f32.gmra.mrb[0].mxu0 %v1360
  %v2076 = vpop.f32.mrb[0].mxu0
  %v2077 = vadd.f32 %v1652, %v2076
  %v2078 = vpop.f32.mrb[0].mxu0
  %2079 = vmatprep.mubr.f32.mxu0 0.0
  %2080 = vmatmul.mubr.f32.gmra.mrb[0].mxu0 %v1363
  %v2081 = vpop.f32.mrb[0].mxu0
  %v2082 = vadd.f32 %v1657, %v2081
  %v2083 = vpop.f32.mrb[0].mxu0
  %2084 = vmatprep.mubr.f32.mxu0 0.0
  %2085 = vmatmul.mubr.f32.gmra.mrb[0].mxu0 %v1366
  %v2086 = vpop.f32.mrb[0].mxu0
  %v2087 = vadd.f32 %v1662, %v2086
  %v2088 = vpop.f32.mrb[0].mxu0
  %2089 = vmatprep.mubr.f32.mxu0 0.0
  %2090 = vmatmul.mubr.f32.gmra.mrb[0].mxu0 %v1369
  %v2091 = vpop.f32.mrb[0].mxu0
  %v2092 = vadd.f32 %v1667, %v2091
  %v2093 = vpop.f32.mrb[0].mxu0
  %2094 = vmatprep.mubr.f32.mxu0 0.0
  %2095 = vmatmul.mubr.f32.gmra.mrb[0].mxu0 %v1372
  %v2096 = vpop.f32.mrb[0].mxu0
  %v2097 = vadd.f32 %v1672, %v2096
  %v2098 = vpop.f32.mrb[0].mxu0
  %2099 = vmatprep.mubr.f32.mxu0 0.0
  %2100 = vmatmul.mubr.f32.gmra.mrb[0].mxu0 %v1375
  %v2101 = vpop.f32.mrb[0].mxu0
  %v2102 = vadd.f32 %v1677, %v2101
  %v2103 = vpop.f32.mrb[0].mxu0
  %2104 = vmatprep.mubr.f32.mxu0 0.0
  %2105 = vmatmul.mubr.f32.gmra.mrb[0].mxu0 %v1378
  %v2106 = vpop.f32.mrb[0].mxu0
  %v2107 = vadd.f32 %v1682, %v2106
  %v2108 = vpop.f32.mrb[0].mxu0
  %2109 = vmatprep.mubr.f32.mxu0 0.0
  %2110 = vmatmul.mubr.f32.gmra.mrb[0].mxu0 %v1381
  %v2111 = vpop.f32.mrb[0].mxu0
  %v2112 = vadd.f32 %v1687, %v2111
  %v2113 = vpop.f32.mrb[0].mxu0
  %2114 = vmatprep.mubr.f32.mxu0 0.0
  %2115 = vmatmul.mubr.f32.gmra.mrb[0].mxu0 %v1384
  %v2116 = vpop.f32.mrb[0].mxu0
  %v2117 = vadd.f32 %v1692, %v2116
  %v2118 = vpop.f32.mrb[0].mxu0
  %2119 = vmatprep.mubr.f32.mxu0 0.0
  %2120 = vmatmul.mubr.f32.gmra.mrb[0].mxu0 %v1387
  %v2121 = vpop.f32.mrb[0].mxu0
  %v2122 = vadd.f32 %v1697, %v2121
  %v2123 = vpop.f32.mrb[0].mxu0
  %2124 = vmatprep.mubr.f32.mxu0 0.0
  %2125 = vmatmul.mubr.f32.gmra.mrb[0].mxu0 %v1390
  %v2126 = vpop.f32.mrb[0].mxu0
  %v2127 = vadd.f32 %v1702, %v2126
  %v2128 = vpop.f32.mrb[0].mxu0
  %2129 = vmatprep.mubr.f32.mxu0 0.0
  %2130 = vmatmul.mubr.f32.gmra.mrb[0].mxu0 %v1393
  %v2131 = vpop.f32.mrb[0].mxu0
  %v2132 = vadd.f32 %v1707, %v2131
  %v2133 = vpop.f32.mrb[0].mxu0
  %2134 = vmatprep.mubr.f32.mxu0 0.0
  %2135 = vmatmul.mubr.f32.gmra.mrb[0].mxu0 %v1396
  %v2136 = vpop.f32.mrb[0].mxu0
  %v2137 = vadd.f32 %v1712, %v2136
  %v2138 = vpop.f32.mrb[0].mxu0
  %2139 = vmatprep.mubr.f32.mxu0 0.0
  %2140 = vmatmul.mubr.f32.gmra.mrb[0].mxu0 %v1399
  %v2141 = vpop.f32.mrb[0].mxu0
  %v2142 = vadd.f32 %v1717, %v2141
  %v2143 = vpop.f32.mrb[0].mxu0
  %2144 = vmatprep.mubr.f32.mxu0 0.0
  %2145 = vmatmul.mubr.f32.gmra.mrb[0].mxu0 %v1402
  %v2146 = vpop.f32.mrb[0].mxu0
  %v2147 = vadd.f32 %v1722, %v2146
  %v2148 = vpop.f32.mrb[0].mxu0
  %2149 = vmatprep.mubr.f32.mxu0 0.0
  %2150 = vmatmul.mubr.f32.gmra.mrb[0].mxu0 %v1405
  %v2151 = vpop.f32.mrb[0].mxu0
  %v2152 = vadd.f32 %v1727, %v2151
  %v2153 = vpop.f32.mrb[0].mxu0
  %2154 = vmatprep.mubr.f32.mxu0 0.0
  %2155 = vmatmul.mubr.f32.gmra.mrb[0].mxu0 %v1408
  %v2156 = vpop.f32.mrb[0].mxu0
  %v2157 = vadd.f32 %v1732, %v2156
  %v2158 = vpop.f32.mrb[0].mxu0
  %2159 = vmatprep.mubr.f32.mxu0 0.0
  %2160 = vmatmul.mubr.f32.gmra.mrb[0].mxu0 %v1411
  %v2161 = vpop.f32.mrb[0].mxu0
  %v2162 = vadd.f32 %v1737, %v2161
  %v2163 = vpop.f32.mrb[0].mxu0
  %2164 = vmatprep.mubr.f32.mxu0 0.0
  %2165 = vmatmul.mubr.f32.gmra.mrb[0].mxu0 %v1414
  %v2166 = vpop.f32.mrb[0].mxu0
  %v2167 = vadd.f32 %v1742, %v2166
  %v2168 = vpop.f32.mrb[0].mxu0
  %2169 = vmatprep.mubr.f32.mxu0 0.0
  %2170 = vmatmul.mubr.f32.gmra.mrb[0].mxu0 %v1417
  %v2171 = vpop.f32.mrb[0].mxu0
  %v2172 = vadd.f32 %v1747, %v2171
  %v2173 = vpop.f32.mrb[0].mxu0
  %2174 = vmatprep.mubr.f32.mxu0 0.0
  %2175 = vmatmul.mubr.f32.gmra.mrb[0].mxu0 %v1420
  %v2176 = vpop.f32.mrb[0].mxu0
  %v2177 = vadd.f32 %v1752, %v2176
  %v2178 = vpop.f32.mrb[0].mxu0
  %2179 = vmatprep.mubr.f32.mxu0 0.0
  %2180 = vmatmul.mubr.f32.gmra.mrb[0].mxu0 %v1423
  %v2181 = vpop.f32.mrb[0].mxu0
  %v2182 = vadd.f32 %v1757, %v2181
  %v2183 = vpop.f32.mrb[0].mxu0
  %2184 = vmatprep.mubr.f32.mxu0 0.0
  %2185 = vmatmul.mubr.f32.gmra.mrb[0].mxu0 %v1426
  %v2186 = vpop.f32.mrb[0].mxu0
  %v2187 = vadd.f32 %v1762, %v2186
  %v2188 = vpop.f32.mrb[0].mxu0
  %2189 = vmatprep.mubr.f32.mxu0 0.0
  %2190 = vmatmul.mubr.f32.gmra.mrb[0].mxu0 %v1429
  %v2191 = vpop.f32.mrb[0].mxu0
  %v2192 = vadd.f32 %v1767, %v2191
  %v2193 = vpop.f32.mrb[0].mxu0
  %2194 = vmatprep.mubr.f32.mxu0 0.0
  %2195 = vmatmul.mubr.f32.gmra.mrb[0].mxu0 %v1432
  %v2196 = vpop.f32.mrb[0].mxu0
  %v2197 = vadd.f32 %v1772, %v2196
  %v2198 = vpop.f32.mrb[0].mxu0
  %2199 = vmatprep.mubr.f32.mxu0 0.0
  %2200 = vmatmul.mubr.f32.gmra.mrb[0].mxu0 %v1435
  %v2201 = vpop.f32.mrb[0].mxu0
  %v2202 = vadd.f32 %v1777, %v2201
  %v2203 = vpop.f32.mrb[0].mxu0
  %2204 = vmatprep.mubr.f32.mxu0 0.0
  %2205 = vmatmul.mubr.f32.gmra.mrb[0].mxu0 %v1438
  %v2206 = vpop.f32.mrb[0].mxu0
  %v2207 = vadd.f32 %v1782, %v2206
  %v2208 = vpop.f32.mrb[0].mxu0
  %2209 = vmatprep.mubr.f32.mxu0 0.0
  %2210 = vmatmul.mubr.f32.gmra.mrb[0].mxu0 %v1441
  %v2211 = vpop.f32.mrb[0].mxu0
  %v2212 = vadd.f32 %v1787, %v2211
  %v2213 = vpop.f32.mrb[0].mxu0
  %2214 = vmatprep.mubr.f32.mxu0 0.0
  %2215 = vmatmul.mubr.f32.gmra.mrb[0].mxu0 %v1444
  %v2216 = vpop.f32.mrb[0].mxu0
  %v2217 = vadd.f32 %v1792, %v2216
  %v2218 = vpop.f32.mrb[0].mxu0
  %2219 = vmatprep.mubr.f32.mxu0 0.0
  %2220 = vmatmul.mubr.f32.gmra.mrb[0].mxu0 %v1447
  %v2221 = vpop.f32.mrb[0].mxu0
  %v2222 = vadd.f32 %v1797, %v2221
  %v2223 = vpop.f32.mrb[0].mxu0
  %2224 = vmatprep.mubr.f32.mxu0 0.0
  %2225 = vmatmul.mubr.f32.gmra.mrb[0].mxu0 %v1450
  %v2226 = vpop.f32.mrb[0].mxu0
  %v2227 = vadd.f32 %v1802, %v2226
  %v2228 = vpop.f32.mrb[0].mxu0
  %2229 = vmatprep.mubr.f32.mxu0 0.0
  %2230 = vmatmul.mubr.f32.gmra.mrb[0].mxu0 %v1453
  %v2231 = vpop.f32.mrb[0].mxu0
  %v2232 = vadd.f32 %v1807, %v2231
  %v2233 = vpop.f32.mrb[0].mxu0
  %2234 = vmatprep.mubr.f32.mxu0 0.0
  %2235 = vmatmul.mubr.f32.gmra.mrb[0].mxu0 %v1456
  %v2236 = vpop.f32.mrb[0].mxu0
  %v2237 = vadd.f32 %v1812, %v2236
  %v2238 = vpop.f32.mrb[0].mxu0
  %2239 = vmatprep.mubr.f32.mxu0 0.0
  %2240 = vmatmul.mubr.f32.gmra.mrb[0].mxu0 %v1459
  %v2241 = vpop.f32.mrb[0].mxu0
  %v2242 = vadd.f32 %v1817, %v2241
  %v2243 = vpop.f32.mrb[0].mxu0
  %2244 = vmatprep.mubr.f32.mxu0 0.0
  %2245 = vmatmul.mubr.f32.gmra.mrb[0].mxu0 %v1462
  %v2246 = vpop.f32.mrb[0].mxu0
  %v2247 = vadd.f32 %v1822, %v2246
  %v2248 = vpop.f32.mrb[0].mxu0
  %2249 = vmatprep.mubr.f32.mxu0 0.0
  %2250 = vmatmul.mubr.f32.gmra.mrb[0].mxu0 %v1465
  %v2251 = vpop.f32.mrb[0].mxu0
  %v2252 = vadd.f32 %v1827, %v2251
  %v2253 = vpop.f32.mrb[0].mxu0
  %2254 = vmatprep.mubr.f32.mxu0 0.0
  %2255 = vmatmul.mubr.f32.gmra.mrb[0].mxu0 %v1468
  %v2256 = vpop.f32.mrb[0].mxu0
  %v2257 = vadd.f32 %v1832, %v2256
  %v2258 = vpop.f32.mrb[0].mxu0
  %2259 = vmatprep.mubr.f32.mxu0 0.0
  %2260 = vmatmul.mubr.f32.gmra.mrb[0].mxu0 %v1471
  %v2261 = vpop.f32.mrb[0].mxu0
  %v2262 = vadd.f32 %v1837, %v2261
  %v2263 = vpop.f32.mrb[0].mxu0
  %2264 = vmatprep.mubr.f32.mxu0 0.0
  %2265 = vmatmul.mubr.f32.gmra.mrb[0].mxu0 %v1474
  %v2266 = vpop.f32.mrb[0].mxu0
  %v2267 = vadd.f32 %v1842, %v2266
  %v2268 = vpop.f32.mrb[0].mxu0
  %2269 = vmatprep.mubr.f32.mxu0 0.0
  %2270 = vmatmul.mubr.f32.gmra.mrb[0].mxu0 %v1477
  %v2271 = vpop.f32.mrb[0].mxu0
  %v2272 = vadd.f32 %v1847, %v2271
  %v2273 = vpop.f32.mrb[0].mxu0
  %2274 = vmatprep.mubr.f32.mxu0 0.0
  %2275 = vmatmul.mubr.f32.gmra.mrb[0].mxu0 %v1480
  %v2276 = vpop.f32.mrb[0].mxu0
  %v2277 = vadd.f32 %v1852, %v2276
  %v2278 = vpop.f32.mrb[0].mxu0
  %2279 = vmatprep.mubr.f32.mxu0 0.0
  %2280 = vmatmul.mubr.f32.gmra.mrb[0].mxu0 %v1483
  %v2281 = vpop.f32.mrb[0].mxu0
  %v2282 = vadd.f32 %v1857, %v2281
  %v2283 = vpop.f32.mrb[0].mxu0
  %2284 = vmatprep.mubr.f32.mxu0 0.0
  %2285 = vmatmul.mubr.f32.gmra.mrb[0].mxu0 %v1486
  %v2286 = vpop.f32.mrb[0].mxu0
  %v2287 = vadd.f32 %v1862, %v2286
  %v2288 = vpop.f32.mrb[0].mxu0
  %2289 = vmatprep.mubr.f32.mxu0 0.0
  %2290 = vmatmul.mubr.f32.gmra.mrb[0].mxu0 %v1489
  %v2291 = vpop.f32.mrb[0].mxu0
  %v2292 = vadd.f32 %v1867, %v2291
  %v2293 = vpop.f32.mrb[0].mxu0
  %2294 = vmatprep.mubr.f32.mxu0 0.0
  %2295 = vmatmul.mubr.f32.gmra.mrb[0].mxu0 %v1492
  %v2296 = vpop.f32.mrb[0].mxu0
  %v2297 = vadd.f32 %v1872, %v2296
  %v2298 = vpop.f32.mrb[0].mxu0
  %2299 = vmatprep.mubr.f32.mxu0 0.0
  %2300 = vmatmul.mubr.f32.gmra.mrb[0].mxu0 %v1495
  %v2301 = vpop.f32.mrb[0].mxu0
  %v2302 = vadd.f32 %v1877, %v2301
  %v2303 = vpop.f32.mrb[0].mxu0
  %2304 = vmatprep.mubr.f32.mxu0 0.0
  %2305 = vmatmul.mubr.f32.gmra.mrb[0].mxu0 %v1498
  %v2306 = vpop.f32.mrb[0].mxu0
  %v2307 = vadd.f32 %v1882, %v2306
  %v2308 = vpop.f32.mrb[0].mxu0
  %2309 = vmatprep.mubr.f32.mxu0 0.0
  %2310 = vmatmul.mubr.f32.gmra.mrb[0].mxu0 %v1501
  %v2311 = vpop.f32.mrb[0].mxu0
  %v2312 = vadd.f32 %v1887, %v2311
  %v2313 = vpop.f32.mrb[0].mxu0
  %2314 = vmatprep.mubr.f32.mxu0 0.0
  %2315 = vmatmul.mubr.f32.gmra.mrb[0].mxu0 %v1504
  %v2316 = vpop.f32.mrb[0].mxu0
  %v2317 = vadd.f32 %v1892, %v2316
  %v2318 = vpop.f32.mrb[0].mxu0
  %2319 = vmatprep.mubr.f32.mxu0 0.0
  %2320 = vmatmul.mubr.f32.gmra.mrb[0].mxu0 %v1507
  %v2321 = vpop.f32.mrb[0].mxu0
  %v2322 = vadd.f32 %v1897, %v2321
  %v2323 = vpop.f32.mrb[0].mxu0
  %2324 = vmatprep.mubr.f32.mxu0 0.0
  %2325 = vmatmul.mubr.f32.gmra.mrb[0].mxu0 %v1510
  %v2326 = vpop.f32.mrb[0].mxu0
  %v2327 = vadd.f32 %v1902, %v2326
  %v2328 = vpop.f32.mrb[0].mxu0
  %2329 = vmatprep.mubr.f32.mxu0 0.0
  %2330 = vmatmul.mubr.f32.gmra.mrb[0].mxu0 %v1513
  %v2331 = vpop.f32.mrb[0].mxu0
  %v2332 = vadd.f32 %v1907, %v2331
  %v2333 = vpop.f32.mrb[0].mxu0
  %2334 = vmatprep.mubr.f32.mxu0 0.0
  %2335 = vmatmul.mubr.f32.gmra.mrb[0].mxu0 %v1516
  %v2336 = vpop.f32.mrb[0].mxu0
  %v2337 = vadd.f32 %v1912, %v2336
  %v2338 = vpop.f32.mrb[0].mxu0
  %2339 = vmatprep.mubr.f32.mxu0 0.0
  %2340 = vmatmul.mubr.f32.gmra.mrb[0].mxu0 %v1519
  %v2341 = vpop.f32.mrb[0].mxu0
  %v2342 = vadd.f32 %v1917, %v2341
  %v2343 = vpop.f32.mrb[0].mxu0
  %2344 = vmatprep.mubr.f32.mxu0 0.0
  %2345 = vmatmul.mubr.f32.gmra.mrb[0].mxu0 %v1522
  %v2346 = vpop.f32.mrb[0].mxu0
  %v2347 = vadd.f32 %v1922, %v2346
  %v2348 = vpop.f32.mrb[0].mxu0
  %2349 = vmatprep.mubr.f32.mxu0 0.0
  %2350 = vmatmul.mubr.f32.gmra.mrb[0].mxu0 %v1525
  %v2351 = vpop.f32.mrb[0].mxu0
  %v2352 = vadd.f32 %v1927, %v2351
  %v2353 = vpop.f32.mrb[0].mxu0
  %2354 = vmatprep.mubr.f32.mxu0 0.0
  %2355 = vmatmul.mubr.f32.gmra.mrb[0].mxu0 %v1528
  %v2356 = vpop.f32.mrb[0].mxu0
  %v2357 = vadd.f32 %v1932, %v2356
  %v2358 = vpop.f32.mrb[0].mxu0
  %2359 = vmatprep.mubr.f32.mxu0 0.0
  %2360 = vmatmul.mubr.f32.gmra.mrb[0].mxu0 %v1531
  %v2361 = vpop.f32.mrb[0].mxu0
  %v2362 = vadd.f32 %v1937, %v2361
  %v2363 = vpop.f32.mrb[0].mxu0
  %2364 = vmatprep.mubr.f32.mxu0 0.0
  %2365 = vmatmul.mubr.f32.gmra.mrb[0].mxu0 %v1534
  %v2366 = vpop.f32.mrb[0].mxu0
  %v2367 = vadd.f32 %v1942, %v2366
  %v2368 = vpop.f32.mrb[0].mxu0
  %2369 = vmatprep.mubr.f32.mxu0 0.0
  %2370 = vmatmul.mubr.f32.gmra.mrb[0].mxu0 %v1537
  %v2371 = vpop.f32.mrb[0].mxu0
  %v2372 = vadd.f32 %v1947, %v2371
  %v2373 = vpop.f32.mrb[0].mxu0
  %2374 = vmatprep.mubr.f32.mxu0 0.0
  %2375 = vmatmul.mubr.f32.gmra.mrb[0].mxu0 %v1540
  %v2376 = vpop.f32.mrb[0].mxu0
  %v2377 = vadd.f32 %v1952, %v2376
  %v2378 = vpop.f32.mrb[0].mxu0
  %2379 = vmatprep.mubr.f32.mxu0 0.0
  %2380 = vmatmul.mubr.f32.gmra.mrb[0].mxu0 %v1543
  %v2381 = vpop.f32.mrb[0].mxu0
  %v2382 = vadd.f32 %v1957, %v2381
  %v2383 = vpop.f32.mrb[0].mxu0
  %2384 = vmatprep.mubr.f32.mxu0 0.0
  %2385 = vmatmul.mubr.f32.gmra.mrb[0].mxu0 %v1546
  %v2386 = vpop.f32.mrb[0].mxu0
  %v2387 = vadd.f32 %v1962, %v2386
  %v2388 = vpop.f32.mrb[0].mxu0
  %2389 = vmatprep.mubr.f32.mxu0 0.0
  %2390 = vmatmul.mubr.f32.gmra.mrb[0].mxu0 %v1549
  %v2391 = vpop.f32.mrb[0].mxu0
  %v2392 = vadd.f32 %v1967, %v2391
  %v2393 = vpop.f32.mrb[0].mxu0
  %2394 = vmatprep.mubr.f32.mxu0 0.0
  %2395 = vmatmul.mubr.f32.gmra.mrb[0].mxu0 %v1552
  %v2396 = vpop.f32.mrb[0].mxu0
  %v2397 = vadd.f32 %v1972, %v2396
  %v2398 = vpop.f32.mrb[0].mxu0
  %2399 = vmatprep.mubr.f32.mxu0 0.0
  %2400 = vmatmul.mubr.f32.gmra.mrb[0].mxu0 %v1555
  %v2401 = vpop.f32.mrb[0].mxu0
  %v2402 = vadd.f32 %v1977, %v2401
  %v2403 = vpop.f32.mrb[0].mxu0
  %2404 = vmatprep.mubr.f32.mxu0 0.0
  %2405 = vmatmul.mubr.f32.gmra.mrb[0].mxu0 %v1558
  %v2406 = vpop.f32.mrb[0].mxu0
  %v2407 = vadd.f32 %v1982, %v2406
  %v2408 = vpop.f32.mrb[0].mxu0
  %2409 = vdwg.mxu0
  %v2410 = vlaneseq
  %v2411 = vshrl.u32 %v2410, 7
  %v2412 = vsub.s32 0, %v2411
  %v2413 = vrot.slane %v24, %v2412
  %2415 = vbcast.lane.b32.xlu0 %v2413, 256
  %v2416 = vpop.permute.xlu0 %2415
  %s2418 = sor.u32 256, 8
  %2419 = vbcast.lane.b32.xlu0 %v2413, %s2418
  %v2420 = vpop.permute.xlu0 %2419
  %s2422 = sor.u32 256, 16
  %2423 = vbcast.lane.b32.xlu0 %v2413, %s2422
  %v2424 = vpop.permute.xlu0 %2423
  %s2426 = sor.u32 256, 24
  %2427 = vbcast.lane.b32.xlu0 %v2413, %s2426
  %v2428 = vpop.permute.xlu0 %2427
  %s2430 = sor.u32 256, 32
  %2431 = vbcast.lane.b32.xlu0 %v2413, %s2430
  %v2432 = vpop.permute.xlu0 %2431
  %s2434 = sor.u32 256, 40
  %2435 = vbcast.lane.b32.xlu0 %v2413, %s2434
  %v2436 = vpop.permute.xlu0 %2435
  %s2438 = sor.u32 256, 48
  %2439 = vbcast.lane.b32.xlu0 %v2413, %s2438
  %v2440 = vpop.permute.xlu0 %2439
  %s2442 = sor.u32 256, 56
  %2443 = vbcast.lane.b32.xlu0 %v2413, %s2442
  %v2444 = vpop.permute.xlu0 %2443
  %v2445 = vadd.f32 %v2052, %v2416
  %v2446 = vadd.f32 %v2057, %v2420
  %v2447 = vadd.f32 %v2062, %v2424
  %v2448 = vadd.f32 %v2067, %v2428
  %v2449 = vadd.f32 %v2072, %v2432
  %v2450 = vadd.f32 %v2077, %v2436
  %v2451 = vadd.f32 %v2082, %v2440
  %v2452 = vadd.f32 %v2087, %v2444
  %v2453 = vadd.f32 %v2092, %v2416
  %v2454 = vadd.f32 %v2097, %v2420
  %v2455 = vadd.f32 %v2102, %v2424
  %v2456 = vadd.f32 %v2107, %v2428
  %v2457 = vadd.f32 %v2112, %v2432
  %v2458 = vadd.f32 %v2117, %v2436
  %v2459 = vadd.f32 %v2122, %v2440
  %v2460 = vadd.f32 %v2127, %v2444
  %v2461 = vadd.f32 %v2132, %v2416
  %v2462 = vadd.f32 %v2137, %v2420
  %v2463 = vadd.f32 %v2142, %v2424
  %v2464 = vadd.f32 %v2147, %v2428
  %v2465 = vadd.f32 %v2152, %v2432
  %v2466 = vadd.f32 %v2157, %v2436
  %v2467 = vadd.f32 %v2162, %v2440
  %v2468 = vadd.f32 %v2167, %v2444
  %v2469 = vadd.f32 %v2172, %v2416
  %v2470 = vadd.f32 %v2177, %v2420
  %v2471 = vadd.f32 %v2182, %v2424
  %v2472 = vadd.f32 %v2187, %v2428
  %v2473 = vadd.f32 %v2192, %v2432
  %v2474 = vadd.f32 %v2197, %v2436
  %v2475 = vadd.f32 %v2202, %v2440
  %v2476 = vadd.f32 %v2207, %v2444
  %v2477 = vadd.f32 %v2212, %v2416
  %v2478 = vadd.f32 %v2217, %v2420
  %v2479 = vadd.f32 %v2222, %v2424
  %v2480 = vadd.f32 %v2227, %v2428
  %v2481 = vadd.f32 %v2232, %v2432
  %v2482 = vadd.f32 %v2237, %v2436
  %v2483 = vadd.f32 %v2242, %v2440
  %v2484 = vadd.f32 %v2247, %v2444
  %v2485 = vadd.f32 %v2252, %v2416
  %v2486 = vadd.f32 %v2257, %v2420
  %v2487 = vadd.f32 %v2262, %v2424
  %v2488 = vadd.f32 %v2267, %v2428
  %v2489 = vadd.f32 %v2272, %v2432
  %v2490 = vadd.f32 %v2277, %v2436
  %v2491 = vadd.f32 %v2282, %v2440
  %v2492 = vadd.f32 %v2287, %v2444
  %v2493 = vadd.f32 %v2292, %v2416
  %v2494 = vadd.f32 %v2297, %v2420
  %v2495 = vadd.f32 %v2302, %v2424
  %v2496 = vadd.f32 %v2307, %v2428
  %v2497 = vadd.f32 %v2312, %v2432
  %v2498 = vadd.f32 %v2317, %v2436
  %v2499 = vadd.f32 %v2322, %v2440
  %v2500 = vadd.f32 %v2327, %v2444
  %v2501 = vadd.f32 %v2332, %v2416
  %v2502 = vadd.f32 %v2337, %v2420
  %v2503 = vadd.f32 %v2342, %v2424
  %v2504 = vadd.f32 %v2347, %v2428
  %v2505 = vadd.f32 %v2352, %v2432
  %v2506 = vadd.f32 %v2357, %v2436
  %v2507 = vadd.f32 %v2362, %v2440
  %v2508 = vadd.f32 %v2367, %v2444
  %v2509 = vadd.f32 %v2372, %v2416
  %v2510 = vadd.f32 %v2377, %v2420
  %v2511 = vadd.f32 %v2382, %v2424
  %v2512 = vadd.f32 %v2387, %v2428
  %v2513 = vadd.f32 %v2392, %v2432
  %v2514 = vadd.f32 %v2397, %v2436
  %v2515 = vadd.f32 %v2402, %v2440
  %v2516 = vadd.f32 %v2407, %v2444
  %v2517 = vmax.f32 %v2445, 0.0
  %v2518 = vmax.f32 %v2446, 0.0
  %v2519 = vmax.f32 %v2447, 0.0
  %v2520 = vmax.f32 %v2448, 0.0
  %v2521 = vmax.f32 %v2449, 0.0
  %v2522 = vmax.f32 %v2450, 0.0
  %v2523 = vmax.f32 %v2451, 0.0
  %v2524 = vmax.f32 %v2452, 0.0
  %v2525 = vmax.f32 %v2453, 0.0
  %v2526 = vmax.f32 %v2454, 0.0
  %v2527 = vmax.f32 %v2455, 0.0
  %v2528 = vmax.f32 %v2456, 0.0
  %v2529 = vmax.f32 %v2457, 0.0
  %v2530 = vmax.f32 %v2458, 0.0
  %v2531 = vmax.f32 %v2459, 0.0
  %v2532 = vmax.f32 %v2460, 0.0
  %v2533 = vmax.f32 %v2461, 0.0
  %v2534 = vmax.f32 %v2462, 0.0
  %v2535 = vmax.f32 %v2463, 0.0
  %v2536 = vmax.f32 %v2464, 0.0
  %v2537 = vmax.f32 %v2465, 0.0
  %v2538 = vmax.f32 %v2466, 0.0
  %v2539 = vmax.f32 %v2467, 0.0
  %v2540 = vmax.f32 %v2468, 0.0
  %v2541 = vmax.f32 %v2469, 0.0
  %v2542 = vmax.f32 %v2470, 0.0
  %v2543 = vmax.f32 %v2471, 0.0
  %v2544 = vmax.f32 %v2472, 0.0
  %v2545 = vmax.f32 %v2473, 0.0
  %v2546 = vmax.f32 %v2474, 0.0
  %v2547 = vmax.f32 %v2475, 0.0
  %v2548 = vmax.f32 %v2476, 0.0
  %v2549 = vmax.f32 %v2477, 0.0
  %v2550 = vmax.f32 %v2478, 0.0
  %v2551 = vmax.f32 %v2479, 0.0
  %v2552 = vmax.f32 %v2480, 0.0
  %v2553 = vmax.f32 %v2481, 0.0
  %v2554 = vmax.f32 %v2482, 0.0
  %v2555 = vmax.f32 %v2483, 0.0
  %v2556 = vmax.f32 %v2484, 0.0
  %v2557 = vmax.f32 %v2485, 0.0
  %v2558 = vmax.f32 %v2486, 0.0
  %v2559 = vmax.f32 %v2487, 0.0
  %v2560 = vmax.f32 %v2488, 0.0
  %v2561 = vmax.f32 %v2489, 0.0
  %v2562 = vmax.f32 %v2490, 0.0
  %v2563 = vmax.f32 %v2491, 0.0
  %v2564 = vmax.f32 %v2492, 0.0
  %v2565 = vmax.f32 %v2493, 0.0
  %v2566 = vmax.f32 %v2494, 0.0
  %v2567 = vmax.f32 %v2495, 0.0
  %v2568 = vmax.f32 %v2496, 0.0
  %v2569 = vmax.f32 %v2497, 0.0
  %v2570 = vmax.f32 %v2498, 0.0
  %v2571 = vmax.f32 %v2499, 0.0
  %v2572 = vmax.f32 %v2500, 0.0
  %v2573 = vmax.f32 %v2501, 0.0
  %v2574 = vmax.f32 %v2502, 0.0
  %v2575 = vmax.f32 %v2503, 0.0
  %v2576 = vmax.f32 %v2504, 0.0
  %v2577 = vmax.f32 %v2505, 0.0
  %v2578 = vmax.f32 %v2506, 0.0
  %v2579 = vmax.f32 %v2507, 0.0
  %v2580 = vmax.f32 %v2508, 0.0
  %v2581 = vmax.f32 %v2509, 0.0
  %v2582 = vmax.f32 %v2510, 0.0
  %v2583 = vmax.f32 %v2511, 0.0
  %v2584 = vmax.f32 %v2512, 0.0
  %v2585 = vmax.f32 %v2513, 0.0
  %v2586 = vmax.f32 %v2514, 0.0
  %v2587 = vmax.f32 %v2515, 0.0
  %v2588 = vmax.f32 %v2516, 0.0
  %v2589 = vmax.f32 %v2525, %v2533
  %v2590 = vmax.f32 %v2526, %v2534
  %v2591 = vmax.f32 %v2527, %v2535
  %v2592 = vmax.f32 %v2528, %v2536
  %v2593 = vmax.f32 %v2529, %v2537
  %v2594 = vmax.f32 %v2530, %v2538
  %v2595 = vmax.f32 %v2531, %v2539
  %v2596 = vmax.f32 %v2532, %v2540
  %v2597 = vmax.f32 %v2541, %v2549
  %v2598 = vmax.f32 %v2542, %v2550
  %v2599 = vmax.f32 %v2543, %v2551
  %v2600 = vmax.f32 %v2544, %v2552
  %v2601 = vmax.f32 %v2545, %v2553
  %v2602 = vmax.f32 %v2546, %v2554
  %v2603 = vmax.f32 %v2547, %v2555
  %v2604 = vmax.f32 %v2548, %v2556
  %v2605 = vmax.f32 %v2557, %v2565
  %v2606 = vmax.f32 %v2558, %v2566
  %v2607 = vmax.f32 %v2559, %v2567
  %v2608 = vmax.f32 %v2560, %v2568
  %v2609 = vmax.f32 %v2561, %v2569
  %v2610 = vmax.f32 %v2562, %v2570
  %v2611 = vmax.f32 %v2563, %v2571
  %v2612 = vmax.f32 %v2564, %v2572
  %v2613 = vmax.f32 %v2573, %v2581
  %v2614 = vmax.f32 %v2574, %v2582
  %v2615 = vmax.f32 %v2575, %v2583
  %v2616 = vmax.f32 %v2576, %v2584
  %v2617 = vmax.f32 %v2577, %v2585
  %v2618 = vmax.f32 %v2578, %v2586
  %v2619 = vmax.f32 %v2579, %v2587
  %v2620 = vmax.f32 %v2580, %v2588
  %2621 = vst [vmem:[%s5] sm:$0xff] %v2517
  %2622 = vst [vmem:[%s5 + $0x8] sm:$0xff] %v2518
  %2623 = vst [vmem:[%s5 + $0x10] sm:$0xff] %v2519
  %2624 = vst [vmem:[%s5 + $0x18] sm:$0xff] %v2520
  %2625 = vst [vmem:[%s5 + $0x20] sm:$0xff] %v2521
  %2626 = vst [vmem:[%s5 + $0x28] sm:$0xff] %v2522
  %2627 = vst [vmem:[%s5 + $0x30] sm:$0xff] %v2523
  %2628 = vst [vmem:[%s5 + $0x38] sm:$0xff] %v2524
  %2629 = vst [vmem:[%s5 + $0x40] sm:$0xff] %v2589
  %2630 = vst [vmem:[%s5 + $0x48] sm:$0xff] %v2590
  %2631 = vst [vmem:[%s5 + $0x50] sm:$0xff] %v2591
  %2632 = vst [vmem:[%s5 + $0x58] sm:$0xff] %v2592
  %2633 = vst [vmem:[%s5 + $0x60] sm:$0xff] %v2593
  %2634 = vst [vmem:[%s5 + $0x68] sm:$0xff] %v2594
  %2635 = vst [vmem:[%s5 + $0x70] sm:$0xff] %v2595
  %2636 = vst [vmem:[%s5 + $0x78] sm:$0xff] %v2596
  %2637 = vst [vmem:[%s5 + $0x80] sm:$0xff] %v2597
  %2638 = vst [vmem:[%s5 + $0x88] sm:$0xff] %v2598
  %2639 = vst [vmem:[%s5 + $0x90] sm:$0xff] %v2599
  %2640 = vst [vmem:[%s5 + $0x98] sm:$0xff] %v2600
  %2641 = vst [vmem:[%s5 + $0xa0] sm:$0xff] %v2601
  %2642 = vst [vmem:[%s5 + $0xa8] sm:$0xff] %v2602
  %2643 = vst [vmem:[%s5 + $0xb0] sm:$0xff] %v2603
  %2644 = vst [vmem:[%s5 + $0xb8] sm:$0xff] %v2604
  %2645 = vst [vmem:[%s5 + $0xc0] sm:$0xff] %v2605
  %2646 = vst [vmem:[%s5 + $0xc8] sm:$0xff] %v2606
  %2647 = vst [vmem:[%s5 + $0xd0] sm:$0xff] %v2607
  %2648 = vst [vmem:[%s5 + $0xd8] sm:$0xff] %v2608
  %2649 = vst [vmem:[%s5 + $0xe0] sm:$0xff] %v2609
  %2650 = vst [vmem:[%s5 + $0xe8] sm:$0xff] %v2610
  %2651 = vst [vmem:[%s5 + $0xf0] sm:$0xff] %v2611
  %2652 = vst [vmem:[%s5 + $0xf8] sm:$0xff] %v2612
  %2653 = vst [vmem:[%s5 + $0x100] sm:$0xff] %v2613
  %2654 = vst [vmem:[%s5 + $0x108] sm:$0xff] %v2614
  %2655 = vst [vmem:[%s5 + $0x110] sm:$0xff] %v2615
  %2656 = vst [vmem:[%s5 + $0x118] sm:$0xff] %v2616
  %2657 = vst [vmem:[%s5 + $0x120] sm:$0xff] %v2617
  %2658 = vst [vmem:[%s5 + $0x128] sm:$0xff] %v2618
  %2659 = vst [vmem:[%s5 + $0x130] sm:$0xff] %v2619
  %2660 = vst [vmem:[%s5 + $0x138] sm:$0xff] %v2620
  // Predicated region
  $region22: #{customized_cnn_forward.1} parent=0 // pred_check
    _
  $region23: #{customized_cnn_forward.1} parent=0 // pred_check_branch
    %2662 = sbr.rel (0) target = $region25
  $region24: #{customized_cnn_forward.1} parent=0 // pred_region
    _
  $region25: #{customized_cnn_forward.1} parent=0 // pred_fallthru
    _
  // Predicated region
  $region26: #{customized_cnn_forward.1} parent=0 // pred_check
    _
  $region27: #{customized_cnn_forward.1} parent=0 // pred_check_branch
    %2664 = sbr.rel (0) target = $region29
  $region28: #{customized_cnn_forward.1} parent=0 // pred_region
    _
  $region29: #{customized_cnn_forward.1} parent=0 // pred_fallthru
    _

</llo_original>
